<compile_context>
chip_gen: v7x
topology: tpu7x:2x2x1
jax: 0.10.0
libtpu: 0.0.40
codegen_flags: <defaults>
</compile_context>

<pallas_src>
import functools

import jax
import jax.numpy as jnp
from jax.experimental import pallas as pl
from jax.experimental.pallas import tpu as pltpu


_SQRT_2_OVER_PI = 0.7978845608028654


def _gelu_tanh(x):
    # tanh-form GELU: tanh lowers to the TPU EUP (a bundle slot otherwise idle
    # here), leaving only ~5 VPU ops per element.  Deviation from the exact erf
    # GELU is <~1e-3 in the activation, well below the bf16 matmul error.
    return 0.5 * x * (1.0 + jnp.tanh(_SQRT_2_OVER_PI * (x + 0.044715 * (x * x * x))))


def _decoder_kernel(x_ref, w1_ref, gmemb_ref, egam_ref, beta_ref, w2b_ref,
                    bias_ref, o_ref, *, bn, hw_pad, eps, inv_count):
    # x_ref   : (rows = bn*hw_pad, hidden)   bf16, rows sample-major
    # w1_ref  : (hidden, K2*cmid)            bf16, first deconv, positions in lanes
    # gmemb   : (K2*cmid, G) 0/1 f32         lane -> group membership
    # egam    : (G, K2*cmid) f32             group -> lane expansion, pre-scaled by gamma
    # beta    : (1, K2*cmid) f32             GroupNorm shift, tiled over positions
    # w2b     : (K2*cmid, K2*nsel*K2)        bf16, block-diagonal second deconv weight
    # bias    : (1, K2*nsel*K2) f32
    # o_ref   : (rows, K2*nsel*K2)           f32
    lanes_mid = w1_ref.shape[1]
    rows = bn * hw_pad

    # ---- Stage A: first transposed conv as one lane-dense bf16 matmul -------
    y = jnp.dot(x_ref[...], w1_ref[...], preferred_element_type=jnp.float32)

    # ---- Stage B: GroupNorm stats + folded affine + GELU --------------------
    # Rows are sample-major with hw_pad % 8 == 0, so splitting the sublane axis
    # into (bn, hw_pad) is a layout no-op: per-sample sums become a sublane
    # reduce and the scale/shift broadcast back to rows is a plain VPU
    # broadcast (no 0/1 pooling / broadcast matmuls on the MXU).
    y3 = y.reshape(bn, hw_pad, lanes_mid)
    ssum = jnp.sum(y3, axis=1)                                   # (bn, lanes_mid)
    ssq = jnp.sum(y3 * y3, axis=1)                               # (bn, lanes_mid)
    # lane -> group pooling and group -> lane expansion are tiny matmuls (M=bn).
    gsum = jnp.dot(ssum, gmemb_ref[...], preferred_element_type=jnp.float32)   # (bn, G)
    gsq = jnp.dot(ssq, gmemb_ref[...], preferred_element_type=jnp.float32)
    gmean = gsum * inv_count
    # clamp: one-pass E[x^2]-E[x]^2 can go slightly negative -> NaN in rsqrt
    gvar = jnp.maximum(gsq * inv_count - gmean * gmean, 0.0)
    ginv = jax.lax.rsqrt(gvar + eps)
    # fold GN affine: scale = gamma*inv, shift = beta - mean*gamma*inv
    scale_l = jnp.dot(ginv, egam_ref[...], preferred_element_type=jnp.float32)  # (bn, lanes_mid)
    shift_l = beta_ref[...] - jnp.dot(gmean * ginv, egam_ref[...],
                                      preferred_element_type=jnp.float32)
    yn3 = y3 * scale_l[:, None, :] + shift_l[:, None, :]         # per-sample VPU broadcast
    ya = _gelu_tanh(yn3).reshape(rows, lanes_mid).astype(jnp.bfloat16)

    # ---- Stage C: second transposed conv as one lane-dense bf16 matmul ------
    out = jnp.dot(ya, w2b_ref[...], preferred_element_type=jnp.float32) + bias_ref[...]
    o_ref[...] = out.astype(o_ref.dtype)


def _pick_block_samples(n, hw_pad, target_rows=1024):
    """Samples per grid step.

    Large enough to amortize the ~0.35us per-grid-step overhead and give the
    MXU long M-runs (~1024 rows/step target); small enough that double-buffered
    blocks stay far inside VMEM (v7x: 64 MiB physical / 32 MiB default scoped);
    and at least 2 grid steps whenever n > 1 so dimension_semantics=("parallel",)
    can split the sample axis across v7x's two TensorCores.
    """
    bn = max(1, min(n, max(1, target_rows // hw_pad)))
    if n > 1:
        bn = min(bn, max(1, n // 2))      # guarantee >= 2 grid steps
    n_pad = -(-n // bn) * bn
    return bn, n_pad


def hmlp_decoder_forward(x, state_labels, params, *, groups=12, eps=1e-5):
    """x: (T, B, hidden, H, W) f32 (torch layout). Returns (T, B, nsel, k*k*H, k*k*W) f32."""
    w1, gamma, beta, w2_full, bias_full = params
    T, B, hidden, H, W = x.shape
    cmid, _, k, _ = w2_full.shape
    k2 = k * k
    n = T * B
    hw = H * W
    hw_pad = -(-hw // 8) * 8             # pad each sample's rows to a sublane multiple
    nsel = int(state_labels.shape[0])
    cg = cmid // groups
    lanes_mid = k2 * cmid                # 16*24 = 384 = 3*128 lanes
    lanes_out = k2 * nsel * k2           # 16*2*16 = 512 = 4*128 lanes

    # ---- plain-JAX glue: token layout (sample-major rows, hw padded to 8) ---
    # (the torch squeeze((-2,-1)) is a no-op for H, W > 1; rearrange == reshape)
    x_tok = x.reshape(n, hidden, hw).transpose(0, 2, 1)          # (n, hw, hidden)
    bn, n_pad = _pick_block_samples(n, hw_pad)
    x_tok = jnp.pad(x_tok, ((0, n_pad - n), (0, hw_pad - hw), (0, 0)))
    x_rows = x_tok.reshape(n_pad * hw_pad, hidden).astype(jnp.bfloat16)
    rows = bn * hw_pad

    # W1 (hidden, cmid, k, k) -> (hidden, K2*cmid) with lane = p*cmid + c, p = i*k+j
    w1_cat = jnp.transpose(w1.reshape(hidden, cmid, k2), (0, 2, 1)).reshape(hidden, lanes_mid)
    w1_cat = w1_cat.astype(jnp.bfloat16)

    # lane -> group membership / group -> lane expansion (pre-scaled by gamma) / shift
    grp = jnp.tile(jnp.arange(cmid) // cg, k2)                                   # (lanes_mid,)
    gmemb = (grp[:, None] == jnp.arange(groups)[None, :]).astype(jnp.float32)    # (lanes_mid, G)
    egam = gmemb.T * jnp.tile(gamma, k2)[None, :]                                # (G, lanes_mid)
    beta_lane = jnp.tile(beta, k2).reshape(1, lanes_mid)

    # W2 selected output channels -> block-diagonal (K2*cmid, K2*nsel*K2), bf16
    w2_sel = w2_full[:, state_labels].reshape(cmid, nsel * k2)
    w2b = jnp.kron(jnp.eye(k2, dtype=w2_sel.dtype), w2_sel).astype(jnp.bfloat16)
    bias_lane = jnp.tile(jnp.repeat(bias_full[state_labels], k2), k2).reshape(1, lanes_out)

    kernel = functools.partial(_decoder_kernel, bn=bn, hw_pad=hw_pad, eps=eps,
                               inv_count=1.0 / float(hw * k2 * cg))

    out = pl.pallas_call(
        kernel,
        out_shape=jax.ShapeDtypeStruct((n_pad * hw_pad, lanes_out), jnp.float32),
        grid_spec=pltpu.PrefetchScalarGridSpec(
            num_scalar_prefetch=0,
            grid=(n_pad // bn,),
            in_specs=[
                pl.BlockSpec((rows, hidden), lambda i: (i, 0)),
                pl.BlockSpec((hidden, lanes_mid), lambda i: (0, 0)),
                pl.BlockSpec((lanes_mid, groups), lambda i: (0, 0)),
                pl.BlockSpec((groups, lanes_mid), lambda i: (0, 0)),
                pl.BlockSpec((1, lanes_mid), lambda i: (0, 0)),
                pl.BlockSpec((lanes_mid, lanes_out), lambda i: (0, 0)),
                pl.BlockSpec((1, lanes_out), lambda i: (0, 0)),
            ],
            out_specs=pl.BlockSpec((rows, lanes_out), lambda i: (i, 0)),
        ),
        compiler_params=pltpu.CompilerParams(
            dimension_semantics=("parallel",)),   # sample blocks -> both TCs on v7x
    )(x_rows, w1_cat, gmemb, egam, beta_lane, w2b, bias_lane)

    # ---- plain-JAX glue: drop padding, pixel-shuffle back to NCHW image -----
    o = out.reshape(n_pad, hw_pad, lanes_out)[:n, :hw]   # (n, hw, lanes_out)
    o = o.reshape(n, H, W, k, k, nsel, k, k)             # (n, h, w, i, j, co, a, b)
    o = o.transpose(0, 5, 1, 3, 6, 2, 4, 7)              # (n, co, h, i, a, w, j, b)
    return o.reshape(T, B, nsel, k * k * H, k * k * W)


def hmlp_decoder_reference(x, state_labels, params, *, groups=12, eps=1e-5):
    """Pure-JAX f32 reference of the PyTorch forward (exact erf GELU)."""
    w1, gamma, beta, w2_full, bias_full = params
    T, B, hidden, H, W = x.shape
    cmid, _, k, _ = w2_full.shape
    n = T * B
    xr = x.reshape(n, hidden, H, W)
    y = jnp.einsum('nchw,cmij->nmhiwj', xr, w1).reshape(n, cmid, k * H, k * W)
    cg = cmid // groups
    yg = y.reshape(n, groups, cg, k * H, k * W)
    mean = yg.mean(axis=(2, 3, 4), keepdims=True)
    var = yg.var(axis=(2, 3, 4), keepdims=True)
    yn = (yg - mean) / jnp.sqrt(var + eps)
    yn = yn.reshape(n, cmid, k * H, k * W)
    yn = yn * gamma[None, :, None, None] + beta[None, :, None, None]
    ya = jax.nn.gelu(yn, approximate=False)
    w2_sel = w2_full[:, state_labels]
    out = jnp.einsum('nmhw,mcij->nchiwj', ya, w2_sel)
    nsel = int(state_labels.shape[0])
    out = out.reshape(n, nsel, k * k * H, k * k * W)
    out = out + bias_full[state_labels][None, :, None, None]
    return out.reshape(T, B, nsel, k * k * H, k * k * W)


def hmlp_decoder_matched_ref(x, state_labels, params, *, groups=12, eps=1e-5):
    """Plain-JAX reference with the kernel's numerics (bf16 MXU operands, f32
    accumulation / GroupNorm, tanh GELU) for a tight-tolerance check."""
    w1, gamma, beta, w2_full, bias_full = params
    T, B, hidden, H, W = x.shape
    cmid, _, k, _ = w2_full.shape
    k2 = k * k
    n, hw = T * B, H * W
    cg = cmid // groups
    nsel = int(state_labels.shape[0])

    xr = x.reshape(n, hidden, hw).transpose(0, 2, 1)                  # (n, hw, hidden)
    w1m = w1.reshape(hidden, cmid, k2)
    y = jnp.einsum('nph,hcq->npqc', xr.astype(jnp.bfloat16),
                   w1m.astype(jnp.bfloat16),
                   preferred_element_type=jnp.float32)                # (n, hw, k2, cmid)
    yg = y.reshape(n, hw, k2, groups, cg)
    mean = yg.mean(axis=(1, 2, 4), keepdims=True)
    var = yg.var(axis=(1, 2, 4), keepdims=True)
    yn = (yg - mean) * jax.lax.rsqrt(var + eps)
    yn = yn.reshape(n, hw, k2, cmid) * gamma + beta
    ya = _gelu_tanh(yn).astype(jnp.bfloat16)
    w2_sel = w2_full[:, state_labels].astype(jnp.bfloat16)            # (cmid, nsel, k, k)
    out = jnp.einsum('npqc,cmab->npqmab', ya, w2_sel,
                     preferred_element_type=jnp.float32)
    out = out + bias_full[state_labels][None, None, None, :, None, None]
    o = out.reshape(n, H, W, k, k, nsel, k, k).transpose(0, 5, 1, 3, 6, 2, 4, 7)
    return o.reshape(T, B, nsel, k * k * H, k * k * W)


if __name__ == "__main__":
    # module config (small but consistent with hMLP_decoder):
    #   patch_size=16 -> kernel_size_ = int(sqrt(16)) = 4
    #   hidden_dim=96 -> hidden_dim // 4 = 24 channels, divisible by groups=12
    k = 4
    hidden_dim = 96
    groups = 12
    out_chans = 3
    T, B, H, W = 2, 2, 2, 2

    keys = jax.random.split(jax.random.PRNGKey(0), 6)
    cmid = hidden_dim // 4
    w1 = 0.02 * jax.random.normal(keys[0], (hidden_dim, cmid, k, k), jnp.float32)
    gamma = 1.0 + 0.1 * jax.random.normal(keys[1], (cmid,), jnp.float32)
    beta = 0.1 * jax.random.normal(keys[2], (cmid,), jnp.float32)
    w2 = 0.05 * jax.random.normal(keys[3], (cmid, out_chans, k, k), jnp.float32)
    bias = 0.1 * jax.random.normal(keys[4], (out_chans,), jnp.float32)
    params = (w1, gamma, beta, w2, bias)

    # x layout matches the torch forward: (T, B, hidden, H, W)
    x = jax.random.normal(keys[5], (T, B, hidden_dim, H, W), jnp.float32)
    state_labels = jnp.array([0, 2], dtype=jnp.int32)   # select 2 of 3 out channels

    out = jax.block_until_ready(hmlp_decoder_forward(x, state_labels, params, groups=groups))
    assert out.shape == (T, B, int(state_labels.shape[0]), k * k * H, k * k * W)

    # Tight check against a reference that uses the same numerics as the kernel.
    matched = hmlp_decoder_matched_ref(x, state_labels, params, groups=groups)
    assert jnp.allclose(out, matched, rtol=1e-2, atol=3e-3), \
        float(jnp.max(jnp.abs(out - matched)))

    # Looser (bf16-level) check against the exact f32 / erf-GELU module semantics.
    ref = hmlp_decoder_reference(x, state_labels, params, groups=groups)
    assert jnp.allclose(out, ref, rtol=2e-2, atol=2e-2), \
        float(jnp.max(jnp.abs(out - ref)))

    print("KERNEL_OK")
</pallas_src>

<mosaic_0001>
module attributes {stable_mosaic.version = 11 : i64} {
  func.func @_decoder_kernel(%arg0: i32, %arg1: memref<16x96xbf16, #tpu.memory_space<vmem>>, %arg2: memref<96x384xbf16, #tpu.memory_space<vmem>>, %arg3: memref<384x12xf32, #tpu.memory_space<vmem>>, %arg4: memref<12x384xf32, #tpu.memory_space<vmem>>, %arg5: memref<1x384xf32, #tpu.memory_space<vmem>>, %arg6: memref<384x512xbf16, #tpu.memory_space<vmem>>, %arg7: memref<1x512xf32, #tpu.memory_space<vmem>>, %arg8: memref<16x512xf32, #tpu.memory_space<vmem>>) attributes {dimension_semantics = [#tpu.dimension_semantics<parallel>], iteration_bounds = array<i64: 2>, scalar_prefetch = 0 : i64, scratch_operands = 0 : i64, tpu.core_type = #tpu.core_type<tc>, window_params = [{transform_indices = @transform_0, window_bounds = array<i64: 16, 96>}, {pipeline_mode = #tpu.pipeline_mode<synchronous>, transform_indices = @transform_1, window_bounds = array<i64: 96, 384>}, {pipeline_mode = #tpu.pipeline_mode<synchronous>, transform_indices = @transform_2, window_bounds = array<i64: 384, 12>}, {pipeline_mode = #tpu.pipeline_mode<synchronous>, transform_indices = @transform_3, window_bounds = array<i64: 12, 384>}, {pipeline_mode = #tpu.pipeline_mode<synchronous>, transform_indices = @transform_4, window_bounds = array<i64: 1, 384>}, {pipeline_mode = #tpu.pipeline_mode<synchronous>, transform_indices = @transform_5, window_bounds = array<i64: 384, 512>}, {pipeline_mode = #tpu.pipeline_mode<synchronous>, transform_indices = @transform_6, window_bounds = array<i64: 1, 512>}, {transform_indices = @transform_7, window_bounds = array<i64: 16, 512>}]} {
    %c0 = arith.constant 0 : index
    %c0_0 = arith.constant 0 : index
    %0 = vector.load %arg1[%c0, %c0_0] : memref<16x96xbf16, #tpu.memory_space<vmem>>, vector<16x96xbf16>
    %c0_1 = arith.constant 0 : index
    %c0_2 = arith.constant 0 : index
    %1 = vector.load %arg2[%c0_1, %c0_2] : memref<96x384xbf16, #tpu.memory_space<vmem>>, vector<96x384xbf16>
    %cst = arith.constant dense<0.000000e+00> : vector<16x384xf32>
    %2 = tpu.matmul %0, %1, %cst {dimension_numbers = #tpu.dot_dimension_numbers<[1], [0], [0], [1], [0, 0, 1, 1], [], []>} : vector<16x96xbf16>, vector<96x384xbf16>, vector<16x384xf32> -> vector<16x384xf32>
    %3 = vector.shape_cast %2 : vector<16x384xf32> to vector<2x8x384xf32>
    %cst_3 = arith.constant dense<0.000000e+00> : vector<2x384xf32>
    %4 = vector.multi_reduction <add>, %3, %cst_3 [1] : vector<2x8x384xf32> to vector<2x384xf32>
    %5 = arith.mulf %3, %3 : vector<2x8x384xf32>
    %cst_4 = arith.constant dense<0.000000e+00> : vector<2x384xf32>
    %6 = vector.multi_reduction <add>, %5, %cst_4 [1] : vector<2x8x384xf32> to vector<2x384xf32>
    %c0_5 = arith.constant 0 : index
    %c0_6 = arith.constant 0 : index
    %7 = vector.load %arg3[%c0_5, %c0_6] : memref<384x12xf32, #tpu.memory_space<vmem>>, vector<384x12xf32>
    %cst_7 = arith.constant dense<0.000000e+00> : vector<2x12xf32>
    %8 = tpu.matmul %4, %7, %cst_7 {dimension_numbers = #tpu.dot_dimension_numbers<[1], [0], [0], [1], [0, 0, 1, 1], [], []>} : vector<2x384xf32>, vector<384x12xf32>, vector<2x12xf32> -> vector<2x12xf32>
    %c0_8 = arith.constant 0 : index
    %c0_9 = arith.constant 0 : index
    %9 = vector.load %arg3[%c0_8, %c0_9] : memref<384x12xf32, #tpu.memory_space<vmem>>, vector<384x12xf32>
    %cst_10 = arith.constant dense<0.000000e+00> : vector<2x12xf32>
    %10 = tpu.matmul %6, %9, %cst_10 {dimension_numbers = #tpu.dot_dimension_numbers<[1], [0], [0], [1], [0, 0, 1, 1], [], []>} : vector<2x384xf32>, vector<384x12xf32>, vector<2x12xf32> -> vector<2x12xf32>
    %cst_11 = arith.constant 7.812500e-03 : f32
    %11 = vector.broadcast %cst_11 : f32 to vector<2x12xf32>
    %12 = arith.mulf %8, %11 : vector<2x12xf32>
    %cst_12 = arith.constant 7.812500e-03 : f32
    %13 = vector.broadcast %cst_12 : f32 to vector<2x12xf32>
    %14 = arith.mulf %10, %13 : vector<2x12xf32>
    %15 = arith.mulf %12, %12 : vector<2x12xf32>
    %16 = arith.subf %14, %15 : vector<2x12xf32>
    %cst_13 = arith.constant 0.000000e+00 : f32
    %17 = vector.broadcast %cst_13 : f32 to vector<2x12xf32>
    %18 = arith.maximumf %16, %17 : vector<2x12xf32>
    %cst_14 = arith.constant 9.99999974E-6 : f32
    %19 = vector.broadcast %cst_14 : f32 to vector<2x12xf32>
    %20 = arith.addf %18, %19 : vector<2x12xf32>
    %21 = math.rsqrt %20 : vector<2x12xf32>
    %c0_15 = arith.constant 0 : index
    %c0_16 = arith.constant 0 : index
    %22 = vector.load %arg4[%c0_15, %c0_16] : memref<12x384xf32, #tpu.memory_space<vmem>>, vector<12x384xf32>
    %cst_17 = arith.constant dense<0.000000e+00> : vector<2x384xf32>
    %23 = tpu.matmul %21, %22, %cst_17 {dimension_numbers = #tpu.dot_dimension_numbers<[1], [0], [0], [1], [0, 0, 1, 1], [], []>} : vector<2x12xf32>, vector<12x384xf32>, vector<2x384xf32> -> vector<2x384xf32>
    %c0_18 = arith.constant 0 : index
    %c0_19 = arith.constant 0 : index
    %24 = vector.load %arg5[%c0_18, %c0_19] : memref<1x384xf32, #tpu.memory_space<vmem>>, vector<1x384xf32>
    %25 = arith.mulf %12, %21 : vector<2x12xf32>
    %c0_20 = arith.constant 0 : index
    %c0_21 = arith.constant 0 : index
    %26 = vector.load %arg4[%c0_20, %c0_21] : memref<12x384xf32, #tpu.memory_space<vmem>>, vector<12x384xf32>
    %cst_22 = arith.constant dense<0.000000e+00> : vector<2x384xf32>
    %27 = tpu.matmul %25, %26, %cst_22 {dimension_numbers = #tpu.dot_dimension_numbers<[1], [0], [0], [1], [0, 0, 1, 1], [], []>} : vector<2x12xf32>, vector<12x384xf32>, vector<2x384xf32> -> vector<2x384xf32>
    %28 = vector.broadcast %24 : vector<1x384xf32> to vector<2x384xf32>
    %29 = arith.subf %28, %27 : vector<2x384xf32>
    %30 = vector.shape_cast %23 : vector<2x384xf32> to vector<2x1x384xf32>
    %31 = vector.broadcast %30 : vector<2x1x384xf32> to vector<2x8x384xf32>
    %32 = arith.mulf %3, %31 : vector<2x8x384xf32>
    %33 = vector.shape_cast %29 : vector<2x384xf32> to vector<2x1x384xf32>
    %34 = vector.broadcast %33 : vector<2x1x384xf32> to vector<2x8x384xf32>
    %35 = arith.addf %32, %34 : vector<2x8x384xf32>
    %cst_23 = arith.constant 5.000000e-01 : f32
    %36 = vector.broadcast %cst_23 : f32 to vector<2x8x384xf32>
    %37 = arith.mulf %36, %35 : vector<2x8x384xf32>
    %38 = arith.mulf %35, %35 : vector<2x8x384xf32>
    %39 = arith.mulf %38, %35 : vector<2x8x384xf32>
    %cst_24 = arith.constant 4.471500e-02 : f32
    %40 = vector.broadcast %cst_24 : f32 to vector<2x8x384xf32>
    %41 = arith.mulf %40, %39 : vector<2x8x384xf32>
    %42 = arith.addf %35, %41 : vector<2x8x384xf32>
    %cst_25 = arith.constant 0.797884583 : f32
    %43 = vector.broadcast %cst_25 : f32 to vector<2x8x384xf32>
    %44 = arith.mulf %43, %42 : vector<2x8x384xf32>
    %45 = math.tanh %44 : vector<2x8x384xf32>
    %cst_26 = arith.constant 1.000000e+00 : f32
    %46 = vector.broadcast %cst_26 : f32 to vector<2x8x384xf32>
    %47 = arith.addf %46, %45 : vector<2x8x384xf32>
    %48 = arith.mulf %37, %47 : vector<2x8x384xf32>
    %49 = vector.shape_cast %48 : vector<2x8x384xf32> to vector<16x384xf32>
    %50 = arith.truncf %49 : vector<16x384xf32> to vector<16x384xbf16>
    %c0_27 = arith.constant 0 : index
    %c0_28 = arith.constant 0 : index
    %51 = vector.load %arg6[%c0_27, %c0_28] : memref<384x512xbf16, #tpu.memory_space<vmem>>, vector<384x512xbf16>
    %cst_29 = arith.constant dense<0.000000e+00> : vector<16x512xf32>
    %52 = tpu.matmul %50, %51, %cst_29 {dimension_numbers = #tpu.dot_dimension_numbers<[1], [0], [0], [1], [0, 0, 1, 1], [], []>} : vector<16x384xbf16>, vector<384x512xbf16>, vector<16x512xf32> -> vector<16x512xf32>
    %c0_30 = arith.constant 0 : index
    %c0_31 = arith.constant 0 : index
    %53 = vector.load %arg7[%c0_30, %c0_31] : memref<1x512xf32, #tpu.memory_space<vmem>>, vector<1x512xf32>
    %54 = vector.broadcast %53 : vector<1x512xf32> to vector<16x512xf32>
    %55 = arith.addf %52, %54 : vector<16x512xf32>
    %c0_32 = arith.constant 0 : index
    %c0_33 = arith.constant 0 : index
    %56 = vector.load %arg8[%c0_32, %c0_33] : memref<16x512xf32, #tpu.memory_space<vmem>>, vector<16x512xf32>
    tpu.vector_store %arg8[%c0_32, %c0_33], %55 {strides = array<i32>} : memref<16x512xf32, #tpu.memory_space<vmem>>, vector<16x512xf32>,
    return
  }
  func.func @transform_0(%arg0: i32) -> (i32, i32) {
    %c0_i32 = arith.constant 0 : i32
    %c0_i32_0 = arith.constant 0 : i32
    return %arg0, %c0_i32 : i32, i32
  }
  func.func @transform_1(%arg0: i32) -> (i32, i32) {
    %c0_i32 = arith.constant 0 : i32
    %c0_i32_0 = arith.constant 0 : i32
    %c0_i32_1 = arith.constant 0 : i32
    return %c0_i32, %c0_i32_0 : i32, i32
  }
  func.func @transform_2(%arg0: i32) -> (i32, i32) {
    %c0_i32 = arith.constant 0 : i32
    %c0_i32_0 = arith.constant 0 : i32
    %c0_i32_1 = arith.constant 0 : i32
    return %c0_i32, %c0_i32_0 : i32, i32
  }
  func.func @transform_3(%arg0: i32) -> (i32, i32) {
    %c0_i32 = arith.constant 0 : i32
    %c0_i32_0 = arith.constant 0 : i32
    %c0_i32_1 = arith.constant 0 : i32
    return %c0_i32, %c0_i32_0 : i32, i32
  }
  func.func @transform_4(%arg0: i32) -> (i32, i32) {
    %c0_i32 = arith.constant 0 : i32
    %c0_i32_0 = arith.constant 0 : i32
    %c0_i32_1 = arith.constant 0 : i32
    return %c0_i32, %c0_i32_0 : i32, i32
  }
  func.func @transform_5(%arg0: i32) -> (i32, i32) {
    %c0_i32 = arith.constant 0 : i32
    %c0_i32_0 = arith.constant 0 : i32
    %c0_i32_1 = arith.constant 0 : i32
    return %c0_i32, %c0_i32_0 : i32, i32
  }
  func.func @transform_6(%arg0: i32) -> (i32, i32) {
    %c0_i32 = arith.constant 0 : i32
    %c0_i32_0 = arith.constant 0 : i32
    %c0_i32_1 = arith.constant 0 : i32
    return %c0_i32, %c0_i32_0 : i32, i32
  }
  func.func @transform_7(%arg0: i32) -> (i32, i32) {
    %c0_i32 = arith.constant 0 : i32
    %c0_i32_0 = arith.constant 0 : i32
    return %arg0, %c0_i32 : i32, i32
  }
}

</mosaic_0001>

<llo_original>
// kernel: tpu_custom_call.1
$region0: #{tpu_custom_call.1}
  #allocation0 [shape = 'u32[]', space=smem, size = 0x4, offset = 0x4, fixed_abs, tag = 'smem constant byte address 0x4 - core index']
  #allocation1 [shape = 'u32[144,128]{1,0:T(1,128)}', space=vmem, size = 0x12000, scoped, tag = 'internal scratch']
  %s0 = inlined_call_operand.vmem [shape: bf16[32,96], index: 0, kind: input, shape index: {}]
  %s1 = inlined_call_operand.vmem [shape: bf16[96,384], index: 1, kind: input, shape index: {}]
  %s2 = inlined_call_operand.vmem [shape: f32[384,12], index: 2, kind: input, shape index: {}]
  %s3 = inlined_call_operand.vmem [shape: f32[12,384], index: 3, kind: input, shape index: {}]
  %s4 = inlined_call_operand.vmem [shape: f32[1,384], index: 4, kind: input, shape index: {}]
  %s5 = inlined_call_operand.hbm [shape: bf16[384,512], index: 5, kind: input, shape index: {}]
  %s6 = inlined_call_operand.vmem [shape: f32[1,512], index: 6, kind: input, shape index: {}]
  %s7 = inlined_call_operand.hbm [shape: f32[32,512], index: 7, kind: output, shape index: {}]
  %s8 = sld [smem:[#allocation0]]
  $region65: #{tpu_custom_call.1} parent=0
    _
  %s10 = ssub.s32 1, %s8
  %s11 = scalar_select 0, %s10, %s8
  $region1: #{tpu_custom_call.1} parent=0
    #allocation2 [shape = 'u8[393216]{0}', space=vmem, size = 0x60000, scoped, tag = 'input window, operand 5, single buffered']
    #allocation3 [shape = 's32[2]{0}', space=sflag, size = 0x8, scoped, tag = 'scoped memory for tpu_custom_call.1']
    #allocation4 [shape = 's32[2]{0}', space=sflag, size = 0x8, scoped, tag = 'scoped memory for tpu_custom_call.1']
    #allocation5 [shape = 'u8[65536]{0}', space=vmem, size = 0x10000, scoped, tag = 'output window, operand 0']
    %12 = vsyncpa [#allocation3], 0
    %13 = vsyncpa [#allocation4], 0
    %s14 = scalar_lea.sflag [#allocation4], 1
    %15 = vsyncpa %s14, 0
    loop: start=0, step=1, limit=4
    $region2: #{tpu_custom_call.1} parent=1 // loop_pre_header
      _
    $region3: #{tpu_custom_call.1} parent=1 // loop_header
      %s17 = sphi 0, %s21
      %p18 = scmp.ge.s32.totalorder %s17, 4
      %s27 = sphi 0, %s29
      %s30 = sphi 0, %s27
      %s31 = sphi 0, %s30
      %s47 = sphi 0, %s31
      %s51 = sphi 0, %s51
      %s53 = sphi 0, %s51
      %s54 = sphi 0, %s53
      %s68 = sphi 0, %s54
      %s72 = sphi 0, %s72
      %s74 = sphi 0, %s72
      %s75 = sphi 0, %s74
      %s89 = sphi 0, %s75
      %s93 = sphi 0, %s93
      %s95 = sphi 0, %s93
      %s96 = sphi 0, %s95
      %s110 = sphi 0, %s96
      %s114 = sphi 0, %s114
      %s116 = sphi 0, %s114
      %s117 = sphi 0, %s116
      %s131 = sphi 0, %s117
      %s135 = sphi 0, %s135
      %s137 = sphi 0, %s135
      %s138 = sphi 0, %s137
      %s152 = sphi 0, %s138
      %s156 = sphi 0, %s156
      %s158 = sphi 0, %s156
      %s159 = sphi 0, %s158
      %s173 = sphi 0, %s159
      %s179 = sphi 0, %s181
      %s182 = sphi 0, %s179
      %s183 = sphi 0, %s182
      %s199 = sphi 0, %s183
    $region4: #{tpu_custom_call.1} parent=1 // loop_header_branch
      %20 = sbr.rel (%p18) target = $region8
    $region5: #{tpu_custom_call.1} parent=1 // loop_body
      %s22 = ssub.s32 %s17, 1
      %s23 = ssub.s32 %s17, 2
      %s24 = sadd.s32 %s17, 1
      %s25 = ssub.s32 %s17, %s24
      %p26 = scmp.eq.s32.totalorder %s25, 0
      %s28 = sadd.s32 %s27, 1
      %s29 = scalar_select %p26, %s27, %s28
      %p32 = pneg %p26
      %p33 = scmp.eq.s32.totalorder %s17, 1
      %p34 = por %p32, %p33
      %p35 = scmp.ne.s32.totalorder %s27, %s30
      %p36 = scmp.eq.s32.totalorder %s17, 0
      %p37 = por %p35, %p36
      %p38 = scmp.ne.s32.totalorder %s27, %s30
      %p39 = scmp.eq.s32.totalorder %s22, 1
      %p40 = por %p38, %p39
      %p41 = scmp.ne.s32.totalorder %s30, %s31
      %p42 = scmp.eq.s32.totalorder %s22, 0
      %p43 = por %p41, %p42
      %p44 = scmp.ne.s32.totalorder %s30, %s31
      %p45 = scmp.eq.s32.totalorder %s23, 1
      %p46 = por %p44, %p45
      %p48 = scmp.ne.s32.totalorder %s31, %s47
      %p49 = scmp.eq.s32.totalorder %s23, 0
      %p50 = por %p48, %p49
      %s52 = sadd.s32 %s51, 1
      %p55 = scmp.eq.s32.totalorder %s17, 1
      %p56 = scmp.ne.s32.totalorder %s51, %s53
      %p57 = scmp.eq.s32.totalorder %s17, 0
      %p58 = por %p56, %p57
      %p59 = scmp.ne.s32.totalorder %s51, %s53
      %p60 = scmp.eq.s32.totalorder %s22, 1
      %p61 = por %p59, %p60
      %p62 = scmp.ne.s32.totalorder %s53, %s54
      %p63 = scmp.eq.s32.totalorder %s22, 0
      %p64 = por %p62, %p63
      %p65 = scmp.ne.s32.totalorder %s53, %s54
      %p66 = scmp.eq.s32.totalorder %s23, 1
      %p67 = por %p65, %p66
      %p69 = scmp.ne.s32.totalorder %s54, %s68
      %p70 = scmp.eq.s32.totalorder %s23, 0
      %p71 = por %p69, %p70
      %s73 = sadd.s32 %s72, 1
      %p76 = scmp.eq.s32.totalorder %s17, 1
      %p77 = scmp.ne.s32.totalorder %s72, %s74
      %p78 = scmp.eq.s32.totalorder %s17, 0
      %p79 = por %p77, %p78
      %p80 = scmp.ne.s32.totalorder %s72, %s74
      %p81 = scmp.eq.s32.totalorder %s22, 1
      %p82 = por %p80, %p81
      %p83 = scmp.ne.s32.totalorder %s74, %s75
      %p84 = scmp.eq.s32.totalorder %s22, 0
      %p85 = por %p83, %p84
      %p86 = scmp.ne.s32.totalorder %s74, %s75
      %p87 = scmp.eq.s32.totalorder %s23, 1
      %p88 = por %p86, %p87
      %p90 = scmp.ne.s32.totalorder %s75, %s89
      %p91 = scmp.eq.s32.totalorder %s23, 0
      %p92 = por %p90, %p91
      %s94 = sadd.s32 %s93, 1
      %p97 = scmp.eq.s32.totalorder %s17, 1
      %p98 = scmp.ne.s32.totalorder %s93, %s95
      %p99 = scmp.eq.s32.totalorder %s17, 0
      %p100 = por %p98, %p99
      %p101 = scmp.ne.s32.totalorder %s93, %s95
      %p102 = scmp.eq.s32.totalorder %s22, 1
      %p103 = por %p101, %p102
      %p104 = scmp.ne.s32.totalorder %s95, %s96
      %p105 = scmp.eq.s32.totalorder %s22, 0
      %p106 = por %p104, %p105
      %p107 = scmp.ne.s32.totalorder %s95, %s96
      %p108 = scmp.eq.s32.totalorder %s23, 1
      %p109 = por %p107, %p108
      %p111 = scmp.ne.s32.totalorder %s96, %s110
      %p112 = scmp.eq.s32.totalorder %s23, 0
      %p113 = por %p111, %p112
      %s115 = sadd.s32 %s114, 1
      %p118 = scmp.eq.s32.totalorder %s17, 1
      %p119 = scmp.ne.s32.totalorder %s114, %s116
      %p120 = scmp.eq.s32.totalorder %s17, 0
      %p121 = por %p119, %p120
      %p122 = scmp.ne.s32.totalorder %s114, %s116
      %p123 = scmp.eq.s32.totalorder %s22, 1
      %p124 = por %p122, %p123
      %p125 = scmp.ne.s32.totalorder %s116, %s117
      %p126 = scmp.eq.s32.totalorder %s22, 0
      %p127 = por %p125, %p126
      %p128 = scmp.ne.s32.totalorder %s116, %s117
      %p129 = scmp.eq.s32.totalorder %s23, 1
      %p130 = por %p128, %p129
      %p132 = scmp.ne.s32.totalorder %s117, %s131
      %p133 = scmp.eq.s32.totalorder %s23, 0
      %p134 = por %p132, %p133
      %s136 = sadd.s32 %s135, 1
      %p139 = scmp.eq.s32.totalorder %s17, 1
      %p140 = scmp.ne.s32.totalorder %s135, %s137
      %p141 = scmp.eq.s32.totalorder %s17, 0
      %p142 = por %p140, %p141
      %p143 = scmp.ne.s32.totalorder %s135, %s137
      %p144 = scmp.eq.s32.totalorder %s22, 1
      %p145 = por %p143, %p144
      %p146 = scmp.ne.s32.totalorder %s137, %s138
      %p147 = scmp.eq.s32.totalorder %s22, 0
      %p148 = por %p146, %p147
      %p149 = scmp.ne.s32.totalorder %s137, %s138
      %p150 = scmp.eq.s32.totalorder %s23, 1
      %p151 = por %p149, %p150
      %p153 = scmp.ne.s32.totalorder %s138, %s152
      %p154 = scmp.eq.s32.totalorder %s23, 0
      %p155 = por %p153, %p154
      %s157 = sadd.s32 %s156, 1
      %p160 = scmp.eq.s32.totalorder %s17, 1
      %p161 = scmp.ne.s32.totalorder %s156, %s158
      %p162 = scmp.eq.s32.totalorder %s17, 0
      %p163 = por %p161, %p162
      %p164 = scmp.ne.s32.totalorder %s156, %s158
      %p165 = scmp.eq.s32.totalorder %s22, 1
      %p166 = por %p164, %p165
      %p167 = scmp.ne.s32.totalorder %s158, %s159
      %p168 = scmp.eq.s32.totalorder %s22, 0
      %p169 = por %p167, %p168
      %p170 = scmp.ne.s32.totalorder %s158, %s159
      %p171 = scmp.eq.s32.totalorder %s23, 1
      %p172 = por %p170, %p171
      %p174 = scmp.ne.s32.totalorder %s159, %s173
      %p175 = scmp.eq.s32.totalorder %s23, 0
      %p176 = por %p174, %p175
      %s177 = ssub.s32 %s17, %s24
      %p178 = scmp.eq.s32.totalorder %s177, 0
      %s180 = sadd.s32 %s179, 1
      %s181 = scalar_select %p178, %s179, %s180
      %p184 = pneg %p178
      %p185 = scmp.eq.s32.totalorder %s17, 1
      %p186 = por %p184, %p185
      %p187 = scmp.ne.s32.totalorder %s179, %s182
      %p188 = scmp.eq.s32.totalorder %s17, 0
      %p189 = por %p187, %p188
      %p190 = scmp.ne.s32.totalorder %s179, %s182
      %p191 = scmp.eq.s32.totalorder %s22, 1
      %p192 = por %p190, %p191
      %p193 = scmp.ne.s32.totalorder %s182, %s183
      %p194 = scmp.eq.s32.totalorder %s22, 0
      %p195 = por %p193, %p194
      %p196 = scmp.ne.s32.totalorder %s182, %s183
      %p197 = scmp.eq.s32.totalorder %s23, 1
      %p198 = por %p196, %p197
      %p200 = scmp.ne.s32.totalorder %s183, %s199
      %p201 = scmp.eq.s32.totalorder %s23, 0
      %p202 = por %p200, %p201
      %p203 = scmp.le.s32.totalorder 1, %s17
      %p204 = scmp.lt.s32.totalorder %s17, 3
      %p205 = pnand %p203, %p204
      %p206 = pneg %p205
      // Predicated region
      $region9: #{tpu_custom_call.1} parent=5 // pred_check
        _
      $region10: #{tpu_custom_call.1} parent=5 // pred_check_branch
        %208 = sbr.rel (%p205) target = $region12
      $region11: #{tpu_custom_call.1} parent=5 // pred_region
        %s209 = ssub.s32 %s17, 1
        // Predicated region
        $region13: #{tpu_custom_call.1} parent=11 // pred_check
          %p210 = pneg %p64
        $region14: #{tpu_custom_call.1} parent=11 // pred_check_branch
          %212 = sbr.rel (%p210) target = $region16
        $region15: #{tpu_custom_call.1} parent=11 // pred_region
          _
        $region16: #{tpu_custom_call.1} parent=11 // pred_fallthru
          _
        // Predicated region
        $region17: #{tpu_custom_call.1} parent=11 // pred_check
          %p213 = pneg %p85
        $region18: #{tpu_custom_call.1} parent=11 // pred_check_branch
          %215 = sbr.rel (%p213) target = $region20
        $region19: #{tpu_custom_call.1} parent=11 // pred_region
          _
        $region20: #{tpu_custom_call.1} parent=11 // pred_fallthru
          _
        // Predicated region
        $region21: #{tpu_custom_call.1} parent=11 // pred_check
          %p216 = pneg %p106
        $region22: #{tpu_custom_call.1} parent=11 // pred_check_branch
          %218 = sbr.rel (%p216) target = $region24
        $region23: #{tpu_custom_call.1} parent=11 // pred_region
          _
        $region24: #{tpu_custom_call.1} parent=11 // pred_fallthru
          _
        // Predicated region
        $region25: #{tpu_custom_call.1} parent=11 // pred_check
          %p219 = pneg %p127
        $region26: #{tpu_custom_call.1} parent=11 // pred_check_branch
          %221 = sbr.rel (%p219) target = $region28
        $region27: #{tpu_custom_call.1} parent=11 // pred_region
          _
        $region28: #{tpu_custom_call.1} parent=11 // pred_fallthru
          _
        // Predicated region
        $region29: #{tpu_custom_call.1} parent=11 // pred_check
          %p222 = pneg %p148
        $region30: #{tpu_custom_call.1} parent=11 // pred_check_branch
          %224 = sbr.rel (%p222) target = $region32
        $region31: #{tpu_custom_call.1} parent=11 // pred_region
          %s226 = ssub.s32 12288, 12288
          %227 = vsyncadd [#allocation3], %s226
          %s228 = sshll.u32 [#allocation2], 4
          %s229 = int_to_ptr.vmem [resolvable:$true] %s228
          %234 = dma.hbm_to_vmem [thread:$0]  %s5, 12288, %s229, [#allocation3], 256, 256, 16
        $region32: #{tpu_custom_call.1} parent=11 // pred_fallthru
          _
        // Predicated region
        $region33: #{tpu_custom_call.1} parent=11 // pred_check
          %p235 = pneg %p169
        $region34: #{tpu_custom_call.1} parent=11 // pred_check_branch
          %237 = sbr.rel (%p235) target = $region36
        $region35: #{tpu_custom_call.1} parent=11 // pred_region
          _
        $region36: #{tpu_custom_call.1} parent=11 // pred_fallthru
          _
      $region12: #{tpu_custom_call.1} parent=5 // pred_fallthru
        _
      %p238 = scmp.lt.s32.totalorder %s17, 2
      // Predicated region
      $region37: #{tpu_custom_call.1} parent=5 // pred_check
        %p239 = pneg %p238
      $region38: #{tpu_custom_call.1} parent=5 // pred_check_branch
        %241 = sbr.rel (%p239) target = $region40
      $region39: #{tpu_custom_call.1} parent=5 // pred_region
        // Predicated region
        $region41: #{tpu_custom_call.1} parent=39 // pred_check
          %p242 = pneg %p37
        $region42: #{tpu_custom_call.1} parent=39 // pred_check_branch
          %244 = sbr.rel (%p242) target = $region44
        $region43: #{tpu_custom_call.1} parent=39 // pred_region
          %s245 = smul.u32 2, %s17
          %p246 = scmp.lt.s32.totalorder %s245, 3
          %s247 = scalar_select %p246, %s245, 3
          %s248 = smul.addr %s247, 4
          %s249 = scalar_lea.vmem %s0, %s248
          %s250 = smul.u32 2, %s17
        $region44: #{tpu_custom_call.1} parent=39 // pred_fallthru
          _
      $region40: #{tpu_custom_call.1} parent=5 // pred_fallthru
        _
      %p251 = scmp.le.s32.totalorder 1, %s17
      %p252 = scmp.lt.s32.totalorder %s17, 3
      %p253 = pnand %p251, %p252
      %p254 = pneg %p253
      // Predicated region
      $region45: #{tpu_custom_call.1} parent=5 // pred_check
        _
      $region46: #{tpu_custom_call.1} parent=5 // pred_check_branch
        %256 = sbr.rel (%p253) target = $region48
      $region47: #{tpu_custom_call.1} parent=5 // pred_region
        %s257 = ssub.s32 %s17, 1
        // Predicated region
        $region49: #{tpu_custom_call.1} parent=47 // pred_check
          %p258 = pneg %p148
        $region50: #{tpu_custom_call.1} parent=47 // pred_check_branch
          %260 = sbr.rel (%p258) target = $region52
        $region51: #{tpu_custom_call.1} parent=47 // pred_region
          %261 = dma.done [#allocation3], 12288
        $region52: #{tpu_custom_call.1} parent=47 // pred_fallthru
          _
        %s262 = smul.u32 2, %s22
        %p263 = scmp.lt.s32.totalorder %s262, 3
        %s264 = scalar_select %p263, %s262, 3
        %s265 = smul.addr %s264, 4
        %s266 = scalar_lea.vmem %s0, %s265
        %p267 = pneg %p43
        %p268 = pneg %p40
        %p269 = pneg %p64
        %p270 = pneg %p61
        %p271 = pneg %p85
        %p272 = pneg %p82
        %p273 = pneg %p106
        %p274 = pneg %p103
        %p275 = pneg %p127
        %p276 = pneg %p124
        %p277 = pneg %p148
        %p278 = pneg %p145
        %p279 = pneg %p169
        %p280 = pneg %p166
        %p281 = pneg %p195
        %p282 = pneg %p192
        %s283 = sand.u32 %s182, 1
        %s284 = scalar_lea.sflag [#allocation4], %s283
        %s285 = sand.u32 %s182, 1
        %s286 = smul.addr %s285, 64
        %s287 = scalar_lea.vmem [#allocation5], %s286
        %s288 = smul.u32 2, %s22
        %p289 = scmp.lt.s32.totalorder %s288, 3
        %s290 = scalar_select %p289, %s288, 3
        %s291 = smul.addr %s290, 4
        %s292 = scalar_lea.vmem %s0, %s291
        %s293 = smul.u32 2, %s22
        %s294 = smul.u32 2, %s22
        %v296 = vld [vmem:[%s292] sm:$0xf]
        %v297 = vld [vmem:[%s292 + $0x4] sm:$0xf]
        %v298 = vld [vmem:[%s1] sm:$0xff]
        %v299 = vld [vmem:[%s1 + $0x8] sm:$0xf]
        %v300 = vld [vmem:[%s1 + $0xc] sm:$0xff]
        %v301 = vld [vmem:[%s1 + $0x14] sm:$0xf]
        %v302 = vld [vmem:[%s1 + $0x18] sm:$0xff]
        %v303 = vld [vmem:[%s1 + $0x20] sm:$0xf]
        %v304 = vld [vmem:[%s1 + $0x24] sm:$0xff]
        %v305 = vld [vmem:[%s1 + $0x2c] sm:$0xf]
        %v306 = vld [vmem:[%s1 + $0x30] sm:$0xff]
        %v307 = vld [vmem:[%s1 + $0x38] sm:$0xf]
        %v308 = vld [vmem:[%s1 + $0x3c] sm:$0xff]
        %v309 = vld [vmem:[%s1 + $0x44] sm:$0xf]
        %v310 = vld [vmem:[%s1 + $0x48] sm:$0xff]
        %v311 = vld [vmem:[%s1 + $0x50] sm:$0xf]
        %v312 = vld [vmem:[%s1 + $0x54] sm:$0xff]
        %v313 = vld [vmem:[%s1 + $0x5c] sm:$0xf]
        %v314 = vld [vmem:[%s1 + $0x60] sm:$0xff]
        %v315 = vld [vmem:[%s1 + $0x68] sm:$0xf]
        %v316 = vld [vmem:[%s1 + $0x6c] sm:$0xff]
        %v317 = vld [vmem:[%s1 + $0x74] sm:$0xf]
        %v318 = vld [vmem:[%s1 + $0x78] sm:$0xff]
        %v319 = vld [vmem:[%s1 + $0x80] sm:$0xf]
        %v320 = vld [vmem:[%s1 + $0x84] sm:$0xff]
        %v321 = vld [vmem:[%s1 + $0x8c] sm:$0xf]
        %v324 = vunpack.c.l.b16 %v296
        %v325 = vunpack.c.l.b16 %v297
        %v326 = vpack.c.b16 %v325, %v324
        %v351 = vunpack.c.l.b16 %v298
        %v352 = vunpack.c.h.b16 %v298
        %v353 = vunpack.c.l.b16 %v299
        %v354 = vunpack.c.l.b16 %v300
        %v355 = vunpack.c.h.b16 %v300
        %v356 = vunpack.c.l.b16 %v301
        %v357 = vunpack.c.l.b16 %v302
        %v358 = vunpack.c.h.b16 %v302
        %v359 = vunpack.c.l.b16 %v303
        %v360 = vunpack.c.l.b16 %v304
        %v361 = vunpack.c.h.b16 %v304
        %v362 = vunpack.c.l.b16 %v305
        %v363 = vunpack.c.l.b16 %v306
        %v364 = vunpack.c.h.b16 %v306
        %v365 = vunpack.c.l.b16 %v307
        %v366 = vunpack.c.l.b16 %v308
        %v367 = vunpack.c.h.b16 %v308
        %v368 = vunpack.c.l.b16 %v309
        %v369 = vunpack.c.l.b16 %v310
        %v370 = vunpack.c.h.b16 %v310
        %v371 = vunpack.c.l.b16 %v311
        %v372 = vunpack.c.l.b16 %v312
        %v373 = vunpack.c.h.b16 %v312
        %v374 = vunpack.c.l.b16 %v313
        %v375 = vunpack.c.l.b16 %v314
        %v376 = vunpack.c.h.b16 %v314
        %v377 = vunpack.c.l.b16 %v315
        %v378 = vunpack.c.l.b16 %v316
        %v379 = vunpack.c.h.b16 %v316
        %v380 = vunpack.c.l.b16 %v317
        %v381 = vunpack.c.l.b16 %v318
        %v382 = vunpack.c.h.b16 %v318
        %v383 = vunpack.c.l.b16 %v319
        %v384 = vunpack.c.l.b16 %v320
        %v385 = vunpack.c.h.b16 %v320
        %v386 = vunpack.c.l.b16 %v321
        %v387 = vpack.c.b16 %v354, %v351
        %v388 = vpack.c.b16 %v355, %v352
        %v389 = vpack.c.b16 %v356, %v353
        %v390 = vpack.c.b16 %v360, %v357
        %v391 = vpack.c.b16 %v361, %v358
        %v392 = vpack.c.b16 %v362, %v359
        %v393 = vpack.c.b16 %v366, %v363
        %v394 = vpack.c.b16 %v367, %v364
        %v395 = vpack.c.b16 %v368, %v365
        %v396 = vpack.c.b16 %v372, %v369
        %v397 = vpack.c.b16 %v373, %v370
        %v398 = vpack.c.b16 %v374, %v371
        %v399 = vpack.c.b16 %v378, %v375
        %v400 = vpack.c.b16 %v379, %v376
        %v401 = vpack.c.b16 %v380, %v377
        %v402 = vpack.c.b16 %v384, %v381
        %v403 = vpack.c.b16 %v385, %v382
        %v404 = vpack.c.b16 %v386, %v383
        %vm423 = vcmask 785408
        %v425 = vsel %vm423, %v326, 0
        %427 = vmatprep.subr.bf16.mxu0 %v388
        %428 = vmatpush1.bf16.msra.mxu0 %v387
        %429 = vmatprep.subr.bf16.mxu0 %v391
        %430 = vmatpush1.bf16.msra.mxu0 %v390
        %431 = vmatprep.subr.bf16.mxu0 %v394
        %432 = vmatpush1.bf16.msra.mxu0 %v393
        %433 = vmatprep.subr.bf16.mxu0 %v397
        %434 = vmatpush1.bf16.msra.mxu0 %v396
        %435 = vmatprep.subr.bf16.mxu0 %v400
        %436 = vmatpush1.bf16.msra.mxu0 %v399
        %437 = vmatprep.subr.bf16.mxu0 %v403
        %438 = vmatpush1.bf16.msra.mxu0 %v402
        %439 = vmatprep.subr.bf16.mxu0 0
        %440 = vmatpush1.bf16.msra.mxu0 0
        %441 = vmatprep.subr.bf16.mxu0 0
        %442 = vmatpush1.bf16.msra.mxu0 0
        %443 = vmatprep.subr.bf16.mxu0 0
        %444 = vmatpush1.bf16.msra.mxu0 0
        %445 = vmatprep.subr.bf16.mxu0 0
        %446 = vmatpush1.bf16.msra.mxu0 0
        %447 = vmatprep.subr.bf16.mxu0 0
        %448 = vmatpush1.bf16.msra.mxu0 0
        %449 = vmatprep.subr.bf16.mxu0 0
        %450 = vmatpush1.bf16.msra.mxu0 0
        %451 = vmatprep.subr.bf16.mxu0 0
        %452 = vmatpush1.bf16.msra.mxu0 0
        %453 = vmatprep.subr.bf16.mxu0 0
        %454 = vmatpush1.bf16.msra.mxu0 0
        %455 = vmatprep.subr.bf16.mxu0 0
        %456 = vmatpush1.bf16.msra.mxu0 0
        %457 = vmatprep.subr.bf16.mxu0 0
        %458 = vmatpush1.bf16.msra.mxu0 0
        %459 = vmatprep.mubr.bf16.mxu0 0
        %460 = vmatmul.mubr.bf16.gmra.mrb[0].mxu0 %v425
        %v461 = vpop.f32.mrb[0].mxu0
        %v462 = vadd.f32 0.0, %v461
        %v463 = vpop.f32.mrb[0].mxu0
        %v464 = vadd.f32 0.0, %v463
        %v465 = vpop.f32.mrb[0].mxu0
        %v466 = vadd.f32 0.0, %v465
        %v467 = vpop.f32.mrb[0].mxu0
        %v468 = vadd.f32 0.0, %v467
        %469 = vdwg.mxu0
        %470 = vmatprep.subr.bf16.mxu0 0
        %471 = vmatpush1.bf16.msra.mxu0 %v389
        %472 = vmatprep.subr.bf16.mxu0 0
        %473 = vmatpush1.bf16.msra.mxu0 %v392
        %474 = vmatprep.subr.bf16.mxu0 0
        %475 = vmatpush1.bf16.msra.mxu0 %v395
        %476 = vmatprep.subr.bf16.mxu0 0
        %477 = vmatpush1.bf16.msra.mxu0 %v398
        %478 = vmatprep.subr.bf16.mxu0 0
        %479 = vmatpush1.bf16.msra.mxu0 %v401
        %480 = vmatprep.subr.bf16.mxu0 0
        %481 = vmatpush1.bf16.msra.mxu0 %v404
        %482 = vmatprep.subr.bf16.mxu0 0
        %483 = vmatpush1.bf16.msra.mxu0 0
        %484 = vmatprep.subr.bf16.mxu0 0
        %485 = vmatpush1.bf16.msra.mxu0 0
        %486 = vmatprep.subr.bf16.mxu0 0
        %487 = vmatpush1.bf16.msra.mxu0 0
        %488 = vmatprep.subr.bf16.mxu0 0
        %489 = vmatpush1.bf16.msra.mxu0 0
        %490 = vmatprep.subr.bf16.mxu0 0
        %491 = vmatpush1.bf16.msra.mxu0 0
        %492 = vmatprep.subr.bf16.mxu0 0
        %493 = vmatpush1.bf16.msra.mxu0 0
        %494 = vmatprep.subr.bf16.mxu0 0
        %495 = vmatpush1.bf16.msra.mxu0 0
        %496 = vmatprep.subr.bf16.mxu0 0
        %497 = vmatpush1.bf16.msra.mxu0 0
        %498 = vmatprep.subr.bf16.mxu0 0
        %499 = vmatpush1.bf16.msra.mxu0 0
        %500 = vmatprep.subr.bf16.mxu0 0
        %501 = vmatpush1.bf16.msra.mxu0 0
        %502 = vmatprep.mubr.bf16.mxu0 0
        %503 = vmatmul.mubr.bf16.gmra.mrb[0].mxu0 %v425
        %v504 = vpop.f32.mrb[0].mxu0
        %v505 = vadd.f32 0.0, %v504
        %v506 = vpop.f32.mrb[0].mxu0
        %v507 = vpop.f32.mrb[0].mxu0
        %v508 = vadd.f32 0.0, %v507
        %v509 = vpop.f32.mrb[0].mxu0
        %510 = vdwg.mxu0
        %v511 = vrot.slane %v462, 4
        %v512 = vadd.f32 %v462, %v511
        %v513 = vrot.slane %v512, 2
        %v514 = vadd.f32 %v512, %v513
        %v515 = vrot.slane %v514, 1
        %v516 = vadd.f32 %v514, %v515
        %v517 = vrot.slane %v464, 4
        %v518 = vadd.f32 %v464, %v517
        %v519 = vrot.slane %v518, 2
        %v520 = vadd.f32 %v518, %v519
        %v521 = vrot.slane %v520, 1
        %v522 = vadd.f32 %v520, %v521
        %v523 = vrot.slane %v505, 4
        %v524 = vadd.f32 %v505, %v523
        %v525 = vrot.slane %v524, 2
        %v526 = vadd.f32 %v524, %v525
        %v527 = vrot.slane %v526, 1
        %v528 = vadd.f32 %v526, %v527
        %v529 = vrot.slane %v466, 4
        %v530 = vadd.f32 %v466, %v529
        %v531 = vrot.slane %v530, 2
        %v532 = vadd.f32 %v530, %v531
        %v533 = vrot.slane %v532, 1
        %v534 = vadd.f32 %v532, %v533
        %v535 = vrot.slane %v468, 4
        %v536 = vadd.f32 %v468, %v535
        %v537 = vrot.slane %v536, 2
        %v538 = vadd.f32 %v536, %v537
        %v539 = vrot.slane %v538, 1
        %v540 = vadd.f32 %v538, %v539
        %v541 = vrot.slane %v508, 4
        %v542 = vadd.f32 %v508, %v541
        %v543 = vrot.slane %v542, 2
        %v544 = vadd.f32 %v542, %v543
        %v545 = vrot.slane %v544, 1
        %v546 = vadd.f32 %v544, %v545
        %v547 = vmul.f32 %v462, %v462
        %v548 = vmul.f32 %v464, %v464
        %v549 = vmul.f32 %v505, %v505
        %v550 = vmul.f32 %v466, %v466
        %v551 = vmul.f32 %v468, %v468
        %v552 = vmul.f32 %v508, %v508
        %v553 = vrot.slane %v547, 4
        %v554 = vadd.f32 %v547, %v553
        %v555 = vrot.slane %v554, 2
        %v556 = vadd.f32 %v554, %v555
        %v557 = vrot.slane %v556, 1
        %v558 = vadd.f32 %v556, %v557
        %v559 = vrot.slane %v548, 4
        %v560 = vadd.f32 %v548, %v559
        %v561 = vrot.slane %v560, 2
        %v562 = vadd.f32 %v560, %v561
        %v563 = vrot.slane %v562, 1
        %v564 = vadd.f32 %v562, %v563
        %v565 = vrot.slane %v549, 4
        %v566 = vadd.f32 %v549, %v565
        %v567 = vrot.slane %v566, 2
        %v568 = vadd.f32 %v566, %v567
        %v569 = vrot.slane %v568, 1
        %v570 = vadd.f32 %v568, %v569
        %v571 = vrot.slane %v550, 4
        %v572 = vadd.f32 %v550, %v571
        %v573 = vrot.slane %v572, 2
        %v574 = vadd.f32 %v572, %v573
        %v575 = vrot.slane %v574, 1
        %v576 = vadd.f32 %v574, %v575
        %v577 = vrot.slane %v551, 4
        %v578 = vadd.f32 %v551, %v577
        %v579 = vrot.slane %v578, 2
        %v580 = vadd.f32 %v578, %v579
        %v581 = vrot.slane %v580, 1
        %v582 = vadd.f32 %v580, %v581
        %v583 = vrot.slane %v552, 4
        %v584 = vadd.f32 %v552, %v583
        %v585 = vrot.slane %v584, 2
        %v586 = vadd.f32 %v584, %v585
        %v587 = vrot.slane %v586, 1
        %v588 = vadd.f32 %v586, %v587
        %v589 = vld [vmem:[%s2] sm:$0xff]
        %v590 = vld [vmem:[%s2 + $0x8] sm:$0xff]
        %v591 = vld [vmem:[%s2 + $0x10] sm:$0xff]
        %v592 = vld [vmem:[%s2 + $0x18] sm:$0xff]
        %v593 = vld [vmem:[%s2 + $0x20] sm:$0xff]
        %v594 = vld [vmem:[%s2 + $0x28] sm:$0xff]
        %v595 = vld [vmem:[%s2 + $0x30] sm:$0xff]
        %v596 = vld [vmem:[%s2 + $0x38] sm:$0xff]
        %v597 = vld [vmem:[%s2 + $0x40] sm:$0xff]
        %v598 = vld [vmem:[%s2 + $0x48] sm:$0xff]
        %v599 = vld [vmem:[%s2 + $0x50] sm:$0xff]
        %v600 = vld [vmem:[%s2 + $0x58] sm:$0xff]
        %v601 = vld [vmem:[%s2 + $0x60] sm:$0xff]
        %v602 = vld [vmem:[%s2 + $0x68] sm:$0xff]
        %v603 = vld [vmem:[%s2 + $0x70] sm:$0xff]
        %v604 = vld [vmem:[%s2 + $0x78] sm:$0xff]
        %v605 = vld [vmem:[%s2 + $0x80] sm:$0xff]
        %v606 = vld [vmem:[%s2 + $0x88] sm:$0xff]
        %v607 = vld [vmem:[%s2 + $0x90] sm:$0xff]
        %v608 = vld [vmem:[%s2 + $0x98] sm:$0xff]
        %v609 = vld [vmem:[%s2 + $0xa0] sm:$0xff]
        %v610 = vld [vmem:[%s2 + $0xa8] sm:$0xff]
        %v611 = vld [vmem:[%s2 + $0xb0] sm:$0xff]
        %v612 = vld [vmem:[%s2 + $0xb8] sm:$0xff]
        %v613 = vld [vmem:[%s2 + $0xc0] sm:$0xff]
        %v614 = vld [vmem:[%s2 + $0xc8] sm:$0xff]
        %v615 = vld [vmem:[%s2 + $0xd0] sm:$0xff]
        %v616 = vld [vmem:[%s2 + $0xd8] sm:$0xff]
        %v617 = vld [vmem:[%s2 + $0xe0] sm:$0xff]
        %v618 = vld [vmem:[%s2 + $0xe8] sm:$0xff]
        %v619 = vld [vmem:[%s2 + $0xf0] sm:$0xff]
        %v620 = vld [vmem:[%s2 + $0xf8] sm:$0xff]
        %v621 = vld [vmem:[%s2 + $0x100] sm:$0xff]
        %v622 = vld [vmem:[%s2 + $0x108] sm:$0xff]
        %v623 = vld [vmem:[%s2 + $0x110] sm:$0xff]
        %v624 = vld [vmem:[%s2 + $0x118] sm:$0xff]
        %v625 = vld [vmem:[%s2 + $0x120] sm:$0xff]
        %v626 = vld [vmem:[%s2 + $0x128] sm:$0xff]
        %v627 = vld [vmem:[%s2 + $0x130] sm:$0xff]
        %v628 = vld [vmem:[%s2 + $0x138] sm:$0xff]
        %v629 = vld [vmem:[%s2 + $0x140] sm:$0xff]
        %v630 = vld [vmem:[%s2 + $0x148] sm:$0xff]
        %v631 = vld [vmem:[%s2 + $0x150] sm:$0xff]
        %v632 = vld [vmem:[%s2 + $0x158] sm:$0xff]
        %v633 = vld [vmem:[%s2 + $0x160] sm:$0xff]
        %v634 = vld [vmem:[%s2 + $0x168] sm:$0xff]
        %v635 = vld [vmem:[%s2 + $0x170] sm:$0xff]
        %v636 = vld [vmem:[%s2 + $0x178] sm:$0xff]
        %vm643 = vcmask 1041409
        %v644 = vsel %vm643, %v534, %v516
        %v645 = vsel %vm643, %v540, %v522
        %v646 = vsel %vm643, %v546, %v528
        %650 = vmatprep.subr.mxu0 0.0
        %651 = vmatpush1.msra.mxu0 %v589
        %652 = vmatprep.subr.mxu0 0.0
        %653 = vmatpush1.msra.mxu0 %v590
        %654 = vmatprep.subr.mxu0 0.0
        %655 = vmatpush1.msra.mxu0 %v591
        %656 = vmatprep.subr.mxu0 0.0
        %657 = vmatpush1.msra.mxu0 %v592
        %658 = vmatprep.subr.mxu0 0.0
        %659 = vmatpush1.msra.mxu0 %v593
        %660 = vmatprep.subr.mxu0 0.0
        %661 = vmatpush1.msra.mxu0 %v594
        %662 = vmatprep.subr.mxu0 0.0
        %663 = vmatpush1.msra.mxu0 %v595
        %664 = vmatprep.subr.mxu0 0.0
        %665 = vmatpush1.msra.mxu0 %v596
        %666 = vmatprep.subr.mxu0 0.0
        %667 = vmatpush1.msra.mxu0 %v597
        %668 = vmatprep.subr.mxu0 0.0
        %669 = vmatpush1.msra.mxu0 %v598
        %670 = vmatprep.subr.mxu0 0.0
        %671 = vmatpush1.msra.mxu0 %v599
        %672 = vmatprep.subr.mxu0 0.0
        %673 = vmatpush1.msra.mxu0 %v600
        %674 = vmatprep.subr.mxu0 0.0
        %675 = vmatpush1.msra.mxu0 %v601
        %676 = vmatprep.subr.mxu0 0.0
        %677 = vmatpush1.msra.mxu0 %v602
        %678 = vmatprep.subr.mxu0 0.0
        %679 = vmatpush1.msra.mxu0 %v603
        %680 = vmatprep.subr.mxu0 0.0
        %681 = vmatpush1.msra.mxu0 %v604
        %682 = vmatprep.subr.mxu0 0.0
        %683 = vmatpush1.msra.mxu0 %v605
        %684 = vmatprep.subr.mxu0 0.0
        %685 = vmatpush1.msra.mxu0 %v606
        %686 = vmatprep.subr.mxu0 0.0
        %687 = vmatpush1.msra.mxu0 %v607
        %688 = vmatprep.subr.mxu0 0.0
        %689 = vmatpush1.msra.mxu0 %v608
        %690 = vmatprep.subr.mxu0 0.0
        %691 = vmatpush1.msra.mxu0 %v609
        %692 = vmatprep.subr.mxu0 0.0
        %693 = vmatpush1.msra.mxu0 %v610
        %694 = vmatprep.subr.mxu0 0.0
        %695 = vmatpush1.msra.mxu0 %v611
        %696 = vmatprep.subr.mxu0 0.0
        %697 = vmatpush1.msra.mxu0 %v612
        %698 = vmatprep.subr.mxu0 0.0
        %699 = vmatpush1.msra.mxu0 %v613
        %700 = vmatprep.subr.mxu0 0.0
        %701 = vmatpush1.msra.mxu0 %v614
        %702 = vmatprep.subr.mxu0 0.0
        %703 = vmatpush1.msra.mxu0 %v615
        %704 = vmatprep.subr.mxu0 0.0
        %705 = vmatpush1.msra.mxu0 %v616
        %706 = vmatprep.subr.mxu0 0.0
        %707 = vmatpush1.msra.mxu0 %v617
        %708 = vmatprep.subr.mxu0 0.0
        %709 = vmatpush1.msra.mxu0 %v618
        %710 = vmatprep.subr.mxu0 0.0
        %711 = vmatpush1.msra.mxu0 %v619
        %712 = vmatprep.subr.mxu0 0.0
        %713 = vmatpush1.msra.mxu0 %v620
        %714 = vmatprep.mubr.f32.mxu0 %v645
        %715 = vmatmul.mubr.f32.gmra.mrb[0].mxu0 %v644
        %v716 = vpop.f32.mrb[0].mxu0
        %v717 = vadd.f32 0.0, %v716
        %v718 = vpop.f32.mrb[0].mxu0
        %719 = vdwg.mxu0
        %720 = vmatprep.subr.mxu0 0.0
        %721 = vmatpush1.msra.mxu0 %v621
        %722 = vmatprep.subr.mxu0 0.0
        %723 = vmatpush1.msra.mxu0 %v622
        %724 = vmatprep.subr.mxu0 0.0
        %725 = vmatpush1.msra.mxu0 %v623
        %726 = vmatprep.subr.mxu0 0.0
        %727 = vmatpush1.msra.mxu0 %v624
        %728 = vmatprep.subr.mxu0 0.0
        %729 = vmatpush1.msra.mxu0 %v625
        %730 = vmatprep.subr.mxu0 0.0
        %731 = vmatpush1.msra.mxu0 %v626
        %732 = vmatprep.subr.mxu0 0.0
        %733 = vmatpush1.msra.mxu0 %v627
        %734 = vmatprep.subr.mxu0 0.0
        %735 = vmatpush1.msra.mxu0 %v628
        %736 = vmatprep.subr.mxu0 0.0
        %737 = vmatpush1.msra.mxu0 %v629
        %738 = vmatprep.subr.mxu0 0.0
        %739 = vmatpush1.msra.mxu0 %v630
        %740 = vmatprep.subr.mxu0 0.0
        %741 = vmatpush1.msra.mxu0 %v631
        %742 = vmatprep.subr.mxu0 0.0
        %743 = vmatpush1.msra.mxu0 %v632
        %744 = vmatprep.subr.mxu0 0.0
        %745 = vmatpush1.msra.mxu0 %v633
        %746 = vmatprep.subr.mxu0 0.0
        %747 = vmatpush1.msra.mxu0 %v634
        %748 = vmatprep.subr.mxu0 0.0
        %749 = vmatpush1.msra.mxu0 %v635
        %750 = vmatprep.subr.mxu0 0.0
        %751 = vmatpush1.msra.mxu0 %v636
        %752 = vmatprep.subr.mxu0 0.0
        %753 = vmatpush1.msra.mxu0 0.0
        %754 = vmatprep.subr.mxu0 0.0
        %755 = vmatpush1.msra.mxu0 0.0
        %756 = vmatprep.subr.mxu0 0.0
        %757 = vmatpush1.msra.mxu0 0.0
        %758 = vmatprep.subr.mxu0 0.0
        %759 = vmatpush1.msra.mxu0 0.0
        %760 = vmatprep.subr.mxu0 0.0
        %761 = vmatpush1.msra.mxu0 0.0
        %762 = vmatprep.subr.mxu0 0.0
        %763 = vmatpush1.msra.mxu0 0.0
        %764 = vmatprep.subr.mxu0 0.0
        %765 = vmatpush1.msra.mxu0 0.0
        %766 = vmatprep.subr.mxu0 0.0
        %767 = vmatpush1.msra.mxu0 0.0
        %768 = vmatprep.subr.mxu0 0.0
        %769 = vmatpush1.msra.mxu0 0.0
        %770 = vmatprep.subr.mxu0 0.0
        %771 = vmatpush1.msra.mxu0 0.0
        %772 = vmatprep.subr.mxu0 0.0
        %773 = vmatpush1.msra.mxu0 0.0
        %774 = vmatprep.subr.mxu0 0.0
        %775 = vmatpush1.msra.mxu0 0.0
        %776 = vmatprep.subr.mxu0 0.0
        %777 = vmatpush1.msra.mxu0 0.0
        %778 = vmatprep.subr.mxu0 0.0
        %779 = vmatpush1.msra.mxu0 0.0
        %780 = vmatprep.subr.mxu0 0.0
        %781 = vmatpush1.msra.mxu0 0.0
        %782 = vmatprep.subr.mxu0 0.0
        %783 = vmatpush1.msra.mxu0 0.0
        %784 = vmatprep.mubr.f32.mxu0 0.0
        %785 = vmatmul.mubr.f32.gmra.mrb[0].mxu0 %v646
        %v786 = vpop.f32.mrb[0].mxu0
        %v787 = vadd.f32 %v717, %v786
        %v788 = vpop.f32.mrb[0].mxu0
        %789 = vdwg.mxu0
        %v796 = vsel %vm643, %v576, %v558
        %v797 = vsel %vm643, %v582, %v564
        %v798 = vsel %vm643, %v588, %v570
        %802 = vmatprep.subr.mxu0 0.0
        %803 = vmatpush1.msra.mxu0 %v589
        %804 = vmatprep.subr.mxu0 0.0
        %805 = vmatpush1.msra.mxu0 %v590
        %806 = vmatprep.subr.mxu0 0.0
        %807 = vmatpush1.msra.mxu0 %v591
        %808 = vmatprep.subr.mxu0 0.0
        %809 = vmatpush1.msra.mxu0 %v592
        %810 = vmatprep.subr.mxu0 0.0
        %811 = vmatpush1.msra.mxu0 %v593
        %812 = vmatprep.subr.mxu0 0.0
        %813 = vmatpush1.msra.mxu0 %v594
        %814 = vmatprep.subr.mxu0 0.0
        %815 = vmatpush1.msra.mxu0 %v595
        %816 = vmatprep.subr.mxu0 0.0
        %817 = vmatpush1.msra.mxu0 %v596
        %818 = vmatprep.subr.mxu0 0.0
        %819 = vmatpush1.msra.mxu0 %v597
        %820 = vmatprep.subr.mxu0 0.0
        %821 = vmatpush1.msra.mxu0 %v598
        %822 = vmatprep.subr.mxu0 0.0
        %823 = vmatpush1.msra.mxu0 %v599
        %824 = vmatprep.subr.mxu0 0.0
        %825 = vmatpush1.msra.mxu0 %v600
        %826 = vmatprep.subr.mxu0 0.0
        %827 = vmatpush1.msra.mxu0 %v601
        %828 = vmatprep.subr.mxu0 0.0
        %829 = vmatpush1.msra.mxu0 %v602
        %830 = vmatprep.subr.mxu0 0.0
        %831 = vmatpush1.msra.mxu0 %v603
        %832 = vmatprep.subr.mxu0 0.0
        %833 = vmatpush1.msra.mxu0 %v604
        %834 = vmatprep.subr.mxu0 0.0
        %835 = vmatpush1.msra.mxu0 %v605
        %836 = vmatprep.subr.mxu0 0.0
        %837 = vmatpush1.msra.mxu0 %v606
        %838 = vmatprep.subr.mxu0 0.0
        %839 = vmatpush1.msra.mxu0 %v607
        %840 = vmatprep.subr.mxu0 0.0
        %841 = vmatpush1.msra.mxu0 %v608
        %842 = vmatprep.subr.mxu0 0.0
        %843 = vmatpush1.msra.mxu0 %v609
        %844 = vmatprep.subr.mxu0 0.0
        %845 = vmatpush1.msra.mxu0 %v610
        %846 = vmatprep.subr.mxu0 0.0
        %847 = vmatpush1.msra.mxu0 %v611
        %848 = vmatprep.subr.mxu0 0.0
        %849 = vmatpush1.msra.mxu0 %v612
        %850 = vmatprep.subr.mxu0 0.0
        %851 = vmatpush1.msra.mxu0 %v613
        %852 = vmatprep.subr.mxu0 0.0
        %853 = vmatpush1.msra.mxu0 %v614
        %854 = vmatprep.subr.mxu0 0.0
        %855 = vmatpush1.msra.mxu0 %v615
        %856 = vmatprep.subr.mxu0 0.0
        %857 = vmatpush1.msra.mxu0 %v616
        %858 = vmatprep.subr.mxu0 0.0
        %859 = vmatpush1.msra.mxu0 %v617
        %860 = vmatprep.subr.mxu0 0.0
        %861 = vmatpush1.msra.mxu0 %v618
        %862 = vmatprep.subr.mxu0 0.0
        %863 = vmatpush1.msra.mxu0 %v619
        %864 = vmatprep.subr.mxu0 0.0
        %865 = vmatpush1.msra.mxu0 %v620
        %866 = vmatprep.mubr.f32.mxu0 %v797
        %867 = vmatmul.mubr.f32.gmra.mrb[0].mxu0 %v796
        %v868 = vpop.f32.mrb[0].mxu0
        %v869 = vadd.f32 0.0, %v868
        %v870 = vpop.f32.mrb[0].mxu0
        %871 = vdwg.mxu0
        %872 = vmatprep.subr.mxu0 0.0
        %873 = vmatpush1.msra.mxu0 %v621
        %874 = vmatprep.subr.mxu0 0.0
        %875 = vmatpush1.msra.mxu0 %v622
        %876 = vmatprep.subr.mxu0 0.0
        %877 = vmatpush1.msra.mxu0 %v623
        %878 = vmatprep.subr.mxu0 0.0
        %879 = vmatpush1.msra.mxu0 %v624
        %880 = vmatprep.subr.mxu0 0.0
        %881 = vmatpush1.msra.mxu0 %v625
        %882 = vmatprep.subr.mxu0 0.0
        %883 = vmatpush1.msra.mxu0 %v626
        %884 = vmatprep.subr.mxu0 0.0
        %885 = vmatpush1.msra.mxu0 %v627
        %886 = vmatprep.subr.mxu0 0.0
        %887 = vmatpush1.msra.mxu0 %v628
        %888 = vmatprep.subr.mxu0 0.0
        %889 = vmatpush1.msra.mxu0 %v629
        %890 = vmatprep.subr.mxu0 0.0
        %891 = vmatpush1.msra.mxu0 %v630
        %892 = vmatprep.subr.mxu0 0.0
        %893 = vmatpush1.msra.mxu0 %v631
        %894 = vmatprep.subr.mxu0 0.0
        %895 = vmatpush1.msra.mxu0 %v632
        %896 = vmatprep.subr.mxu0 0.0
        %897 = vmatpush1.msra.mxu0 %v633
        %898 = vmatprep.subr.mxu0 0.0
        %899 = vmatpush1.msra.mxu0 %v634
        %900 = vmatprep.subr.mxu0 0.0
        %901 = vmatpush1.msra.mxu0 %v635
        %902 = vmatprep.subr.mxu0 0.0
        %903 = vmatpush1.msra.mxu0 %v636
        %904 = vmatprep.subr.mxu0 0.0
        %905 = vmatpush1.msra.mxu0 0.0
        %906 = vmatprep.subr.mxu0 0.0
        %907 = vmatpush1.msra.mxu0 0.0
        %908 = vmatprep.subr.mxu0 0.0
        %909 = vmatpush1.msra.mxu0 0.0
        %910 = vmatprep.subr.mxu0 0.0
        %911 = vmatpush1.msra.mxu0 0.0
        %912 = vmatprep.subr.mxu0 0.0
        %913 = vmatpush1.msra.mxu0 0.0
        %914 = vmatprep.subr.mxu0 0.0
        %915 = vmatpush1.msra.mxu0 0.0
        %916 = vmatprep.subr.mxu0 0.0
        %917 = vmatpush1.msra.mxu0 0.0
        %918 = vmatprep.subr.mxu0 0.0
        %919 = vmatpush1.msra.mxu0 0.0
        %920 = vmatprep.subr.mxu0 0.0
        %921 = vmatpush1.msra.mxu0 0.0
        %922 = vmatprep.subr.mxu0 0.0
        %923 = vmatpush1.msra.mxu0 0.0
        %924 = vmatprep.subr.mxu0 0.0
        %925 = vmatpush1.msra.mxu0 0.0
        %926 = vmatprep.subr.mxu0 0.0
        %927 = vmatpush1.msra.mxu0 0.0
        %928 = vmatprep.subr.mxu0 0.0
        %929 = vmatpush1.msra.mxu0 0.0
        %930 = vmatprep.subr.mxu0 0.0
        %931 = vmatpush1.msra.mxu0 0.0
        %932 = vmatprep.subr.mxu0 0.0
        %933 = vmatpush1.msra.mxu0 0.0
        %934 = vmatprep.subr.mxu0 0.0
        %935 = vmatpush1.msra.mxu0 0.0
        %936 = vmatprep.mubr.f32.mxu0 0.0
        %937 = vmatmul.mubr.f32.gmra.mrb[0].mxu0 %v798
        %v938 = vpop.f32.mrb[0].mxu0
        %v939 = vadd.f32 %v869, %v938
        %v940 = vpop.f32.mrb[0].mxu0
        %941 = vdwg.mxu0
        %v942 = vmul.f32 %v787, 0.0078125
        %v943 = vmul.f32 %v939, 0.0078125
        %v944 = vmul.f32 %v942, %v942
        %v945 = vsub.f32 %v943, %v944
        %v946 = vmax.f32 %v945, 0.0
        %v947 = vadd.f32 %v946, 1e-05
        %v948 = vrsqrt.pop %v947
        %v949 = vld [vmem:[%s3] sm:$0xff]
        %v950 = vld [vmem:[%s3 + $0x8] sm:$0xff]
        %v951 = vld [vmem:[%s3 + $0x10] sm:$0xff]
        %v952 = vld [vmem:[%s3 + $0x18] sm:$0xf]
        %v953 = vld [vmem:[%s3 + $0x20] sm:$0xf]
        %v954 = vld [vmem:[%s3 + $0x28] sm:$0xf]
        %vm955 = vcmask 97280
        %v957 = vsel %vm955, %v948, 0
        %vm959 = vcmask 1043456
        %v961 = vsel %vm959, %v952, 0
        %v964 = vsel %vm959, %v953, 0
        %v967 = vsel %vm959, %v954, 0
        %969 = vmatprep.subr.mxu0 %v950
        %970 = vmatpush1.msra.mxu0 %v949
        %971 = vmatprep.subr.mxu0 %v964
        %972 = vmatpush1.msra.mxu0 %v961
        %973 = vmatprep.subr.mxu0 0.0
        %974 = vmatpush1.msra.mxu0 0.0
        %975 = vmatprep.subr.mxu0 0.0
        %976 = vmatpush1.msra.mxu0 0.0
        %977 = vmatprep.subr.mxu0 0.0
        %978 = vmatpush1.msra.mxu0 0.0
        %979 = vmatprep.subr.mxu0 0.0
        %980 = vmatpush1.msra.mxu0 0.0
        %981 = vmatprep.subr.mxu0 0.0
        %982 = vmatpush1.msra.mxu0 0.0
        %983 = vmatprep.subr.mxu0 0.0
        %984 = vmatpush1.msra.mxu0 0.0
        %985 = vmatprep.subr.mxu0 0.0
        %986 = vmatpush1.msra.mxu0 0.0
        %987 = vmatprep.subr.mxu0 0.0
        %988 = vmatpush1.msra.mxu0 0.0
        %989 = vmatprep.subr.mxu0 0.0
        %990 = vmatpush1.msra.mxu0 0.0
        %991 = vmatprep.subr.mxu0 0.0
        %992 = vmatpush1.msra.mxu0 0.0
        %993 = vmatprep.subr.mxu0 0.0
        %994 = vmatpush1.msra.mxu0 0.0
        %995 = vmatprep.subr.mxu0 0.0
        %996 = vmatpush1.msra.mxu0 0.0
        %997 = vmatprep.subr.mxu0 0.0
        %998 = vmatpush1.msra.mxu0 0.0
        %999 = vmatprep.subr.mxu0 0.0
        %1000 = vmatpush1.msra.mxu0 0.0
        %1001 = vmatprep.subr.mxu0 0.0
        %1002 = vmatpush1.msra.mxu0 0.0
        %1003 = vmatprep.subr.mxu0 0.0
        %1004 = vmatpush1.msra.mxu0 0.0
        %1005 = vmatprep.subr.mxu0 0.0
        %1006 = vmatpush1.msra.mxu0 0.0
        %1007 = vmatprep.subr.mxu0 0.0
        %1008 = vmatpush1.msra.mxu0 0.0
        %1009 = vmatprep.subr.mxu0 0.0
        %1010 = vmatpush1.msra.mxu0 0.0
        %1011 = vmatprep.subr.mxu0 0.0
        %1012 = vmatpush1.msra.mxu0 0.0
        %1013 = vmatprep.subr.mxu0 0.0
        %1014 = vmatpush1.msra.mxu0 0.0
        %1015 = vmatprep.subr.mxu0 0.0
        %1016 = vmatpush1.msra.mxu0 0.0
        %1017 = vmatprep.subr.mxu0 0.0
        %1018 = vmatpush1.msra.mxu0 0.0
        %1019 = vmatprep.subr.mxu0 0.0
        %1020 = vmatpush1.msra.mxu0 0.0
        %1021 = vmatprep.subr.mxu0 0.0
        %1022 = vmatpush1.msra.mxu0 0.0
        %1023 = vmatprep.subr.mxu0 0.0
        %1024 = vmatpush1.msra.mxu0 0.0
        %1025 = vmatprep.subr.mxu0 0.0
        %1026 = vmatpush1.msra.mxu0 0.0
        %1027 = vmatprep.subr.mxu0 0.0
        %1028 = vmatpush1.msra.mxu0 0.0
        %1029 = vmatprep.subr.mxu0 0.0
        %1030 = vmatpush1.msra.mxu0 0.0
        %1031 = vmatprep.subr.mxu0 0.0
        %1032 = vmatpush1.msra.mxu0 0.0
        %1033 = vmatprep.mubr.f32.mxu0 0.0
        %1034 = vmatmul.mubr.f32.gmra.mrb[0].mxu0 %v957
        %v1035 = vpop.f32.mrb[0].mxu0
        %v1036 = vadd.f32 0.0, %v1035
        %v1037 = vpop.f32.mrb[0].mxu0
        %v1038 = vadd.f32 0.0, %v1037
        %1039 = vdwg.mxu0
        %1040 = vmatprep.subr.mxu0 0.0
        %1041 = vmatpush1.msra.mxu0 %v951
        %1042 = vmatprep.subr.mxu0 0.0
        %1043 = vmatpush1.msra.mxu0 %v967
        %1044 = vmatprep.subr.mxu0 0.0
        %1045 = vmatpush1.msra.mxu0 0.0
        %1046 = vmatprep.subr.mxu0 0.0
        %1047 = vmatpush1.msra.mxu0 0.0
        %1048 = vmatprep.subr.mxu0 0.0
        %1049 = vmatpush1.msra.mxu0 0.0
        %1050 = vmatprep.subr.mxu0 0.0
        %1051 = vmatpush1.msra.mxu0 0.0
        %1052 = vmatprep.subr.mxu0 0.0
        %1053 = vmatpush1.msra.mxu0 0.0
        %1054 = vmatprep.subr.mxu0 0.0
        %1055 = vmatpush1.msra.mxu0 0.0
        %1056 = vmatprep.subr.mxu0 0.0
        %1057 = vmatpush1.msra.mxu0 0.0
        %1058 = vmatprep.subr.mxu0 0.0
        %1059 = vmatpush1.msra.mxu0 0.0
        %1060 = vmatprep.subr.mxu0 0.0
        %1061 = vmatpush1.msra.mxu0 0.0
        %1062 = vmatprep.subr.mxu0 0.0
        %1063 = vmatpush1.msra.mxu0 0.0
        %1064 = vmatprep.subr.mxu0 0.0
        %1065 = vmatpush1.msra.mxu0 0.0
        %1066 = vmatprep.subr.mxu0 0.0
        %1067 = vmatpush1.msra.mxu0 0.0
        %1068 = vmatprep.subr.mxu0 0.0
        %1069 = vmatpush1.msra.mxu0 0.0
        %1070 = vmatprep.subr.mxu0 0.0
        %1071 = vmatpush1.msra.mxu0 0.0
        %1072 = vmatprep.subr.mxu0 0.0
        %1073 = vmatpush1.msra.mxu0 0.0
        %1074 = vmatprep.subr.mxu0 0.0
        %1075 = vmatpush1.msra.mxu0 0.0
        %1076 = vmatprep.subr.mxu0 0.0
        %1077 = vmatpush1.msra.mxu0 0.0
        %1078 = vmatprep.subr.mxu0 0.0
        %1079 = vmatpush1.msra.mxu0 0.0
        %1080 = vmatprep.subr.mxu0 0.0
        %1081 = vmatpush1.msra.mxu0 0.0
        %1082 = vmatprep.subr.mxu0 0.0
        %1083 = vmatpush1.msra.mxu0 0.0
        %1084 = vmatprep.subr.mxu0 0.0
        %1085 = vmatpush1.msra.mxu0 0.0
        %1086 = vmatprep.subr.mxu0 0.0
        %1087 = vmatpush1.msra.mxu0 0.0
        %1088 = vmatprep.subr.mxu0 0.0
        %1089 = vmatpush1.msra.mxu0 0.0
        %1090 = vmatprep.subr.mxu0 0.0
        %1091 = vmatpush1.msra.mxu0 0.0
        %1092 = vmatprep.subr.mxu0 0.0
        %1093 = vmatpush1.msra.mxu0 0.0
        %1094 = vmatprep.subr.mxu0 0.0
        %1095 = vmatpush1.msra.mxu0 0.0
        %1096 = vmatprep.subr.mxu0 0.0
        %1097 = vmatpush1.msra.mxu0 0.0
        %1098 = vmatprep.subr.mxu0 0.0
        %1099 = vmatpush1.msra.mxu0 0.0
        %1100 = vmatprep.subr.mxu0 0.0
        %1101 = vmatpush1.msra.mxu0 0.0
        %1102 = vmatprep.subr.mxu0 0.0
        %1103 = vmatpush1.msra.mxu0 0.0
        %1104 = vmatprep.mubr.f32.mxu0 0.0
        %1105 = vmatmul.mubr.f32.gmra.mrb[0].mxu0 %v957
        %v1106 = vpop.f32.mrb[0].mxu0
        %v1107 = vadd.f32 0.0, %v1106
        %v1108 = vpop.f32.mrb[0].mxu0
        %1109 = vdwg.mxu0
        %v1110 = vld [vmem:[%s4] sm:$0x7]
        %v1111 = vmul.f32 %v942, %v948
        %v1113 = vsel %vm955, %v1111, 0
        %1115 = vmatprep.subr.mxu0 %v950
        %1116 = vmatpush1.msra.mxu0 %v949
        %1117 = vmatprep.subr.mxu0 %v964
        %1118 = vmatpush1.msra.mxu0 %v961
        %1119 = vmatprep.subr.mxu0 0.0
        %1120 = vmatpush1.msra.mxu0 0.0
        %1121 = vmatprep.subr.mxu0 0.0
        %1122 = vmatpush1.msra.mxu0 0.0
        %1123 = vmatprep.subr.mxu0 0.0
        %1124 = vmatpush1.msra.mxu0 0.0
        %1125 = vmatprep.subr.mxu0 0.0
        %1126 = vmatpush1.msra.mxu0 0.0
        %1127 = vmatprep.subr.mxu0 0.0
        %1128 = vmatpush1.msra.mxu0 0.0
        %1129 = vmatprep.subr.mxu0 0.0
        %1130 = vmatpush1.msra.mxu0 0.0
        %1131 = vmatprep.subr.mxu0 0.0
        %1132 = vmatpush1.msra.mxu0 0.0
        %1133 = vmatprep.subr.mxu0 0.0
        %1134 = vmatpush1.msra.mxu0 0.0
        %1135 = vmatprep.subr.mxu0 0.0
        %1136 = vmatpush1.msra.mxu0 0.0
        %1137 = vmatprep.subr.mxu0 0.0
        %1138 = vmatpush1.msra.mxu0 0.0
        %1139 = vmatprep.subr.mxu0 0.0
        %1140 = vmatpush1.msra.mxu0 0.0
        %1141 = vmatprep.subr.mxu0 0.0
        %1142 = vmatpush1.msra.mxu0 0.0
        %1143 = vmatprep.subr.mxu0 0.0
        %1144 = vmatpush1.msra.mxu0 0.0
        %1145 = vmatprep.subr.mxu0 0.0
        %1146 = vmatpush1.msra.mxu0 0.0
        %1147 = vmatprep.subr.mxu0 0.0
        %1148 = vmatpush1.msra.mxu0 0.0
        %1149 = vmatprep.subr.mxu0 0.0
        %1150 = vmatpush1.msra.mxu0 0.0
        %1151 = vmatprep.subr.mxu0 0.0
        %1152 = vmatpush1.msra.mxu0 0.0
        %1153 = vmatprep.subr.mxu0 0.0
        %1154 = vmatpush1.msra.mxu0 0.0
        %1155 = vmatprep.subr.mxu0 0.0
        %1156 = vmatpush1.msra.mxu0 0.0
        %1157 = vmatprep.subr.mxu0 0.0
        %1158 = vmatpush1.msra.mxu0 0.0
        %1159 = vmatprep.subr.mxu0 0.0
        %1160 = vmatpush1.msra.mxu0 0.0
        %1161 = vmatprep.subr.mxu0 0.0
        %1162 = vmatpush1.msra.mxu0 0.0
        %1163 = vmatprep.subr.mxu0 0.0
        %1164 = vmatpush1.msra.mxu0 0.0
        %1165 = vmatprep.subr.mxu0 0.0
        %1166 = vmatpush1.msra.mxu0 0.0
        %1167 = vmatprep.subr.mxu0 0.0
        %1168 = vmatpush1.msra.mxu0 0.0
        %1169 = vmatprep.subr.mxu0 0.0
        %1170 = vmatpush1.msra.mxu0 0.0
        %1171 = vmatprep.subr.mxu0 0.0
        %1172 = vmatpush1.msra.mxu0 0.0
        %1173 = vmatprep.subr.mxu0 0.0
        %1174 = vmatpush1.msra.mxu0 0.0
        %1175 = vmatprep.subr.mxu0 0.0
        %1176 = vmatpush1.msra.mxu0 0.0
        %1177 = vmatprep.subr.mxu0 0.0
        %1178 = vmatpush1.msra.mxu0 0.0
        %1179 = vmatprep.mubr.f32.mxu0 0.0
        %1180 = vmatmul.mubr.f32.gmra.mrb[0].mxu0 %v1113
        %v1181 = vpop.f32.mrb[0].mxu0
        %v1182 = vadd.f32 0.0, %v1181
        %v1183 = vpop.f32.mrb[0].mxu0
        %v1184 = vadd.f32 0.0, %v1183
        %1185 = vdwg.mxu0
        %1186 = vmatprep.subr.mxu0 0.0
        %1187 = vmatpush1.msra.mxu0 %v951
        %1188 = vmatprep.subr.mxu0 0.0
        %1189 = vmatpush1.msra.mxu0 %v967
        %1190 = vmatprep.subr.mxu0 0.0
        %1191 = vmatpush1.msra.mxu0 0.0
        %1192 = vmatprep.subr.mxu0 0.0
        %1193 = vmatpush1.msra.mxu0 0.0
        %1194 = vmatprep.subr.mxu0 0.0
        %1195 = vmatpush1.msra.mxu0 0.0
        %1196 = vmatprep.subr.mxu0 0.0
        %1197 = vmatpush1.msra.mxu0 0.0
        %1198 = vmatprep.subr.mxu0 0.0
        %1199 = vmatpush1.msra.mxu0 0.0
        %1200 = vmatprep.subr.mxu0 0.0
        %1201 = vmatpush1.msra.mxu0 0.0
        %1202 = vmatprep.subr.mxu0 0.0
        %1203 = vmatpush1.msra.mxu0 0.0
        %1204 = vmatprep.subr.mxu0 0.0
        %1205 = vmatpush1.msra.mxu0 0.0
        %1206 = vmatprep.subr.mxu0 0.0
        %1207 = vmatpush1.msra.mxu0 0.0
        %1208 = vmatprep.subr.mxu0 0.0
        %1209 = vmatpush1.msra.mxu0 0.0
        %1210 = vmatprep.subr.mxu0 0.0
        %1211 = vmatpush1.msra.mxu0 0.0
        %1212 = vmatprep.subr.mxu0 0.0
        %1213 = vmatpush1.msra.mxu0 0.0
        %1214 = vmatprep.subr.mxu0 0.0
        %1215 = vmatpush1.msra.mxu0 0.0
        %1216 = vmatprep.subr.mxu0 0.0
        %1217 = vmatpush1.msra.mxu0 0.0
        %1218 = vmatprep.subr.mxu0 0.0
        %1219 = vmatpush1.msra.mxu0 0.0
        %1220 = vmatprep.subr.mxu0 0.0
        %1221 = vmatpush1.msra.mxu0 0.0
        %1222 = vmatprep.subr.mxu0 0.0
        %1223 = vmatpush1.msra.mxu0 0.0
        %1224 = vmatprep.subr.mxu0 0.0
        %1225 = vmatpush1.msra.mxu0 0.0
        %1226 = vmatprep.subr.mxu0 0.0
        %1227 = vmatpush1.msra.mxu0 0.0
        %1228 = vmatprep.subr.mxu0 0.0
        %1229 = vmatpush1.msra.mxu0 0.0
        %1230 = vmatprep.subr.mxu0 0.0
        %1231 = vmatpush1.msra.mxu0 0.0
        %1232 = vmatprep.subr.mxu0 0.0
        %1233 = vmatpush1.msra.mxu0 0.0
        %1234 = vmatprep.subr.mxu0 0.0
        %1235 = vmatpush1.msra.mxu0 0.0
        %1236 = vmatprep.subr.mxu0 0.0
        %1237 = vmatpush1.msra.mxu0 0.0
        %1238 = vmatprep.subr.mxu0 0.0
        %1239 = vmatpush1.msra.mxu0 0.0
        %1240 = vmatprep.subr.mxu0 0.0
        %1241 = vmatpush1.msra.mxu0 0.0
        %1242 = vmatprep.subr.mxu0 0.0
        %1243 = vmatpush1.msra.mxu0 0.0
        %1244 = vmatprep.subr.mxu0 0.0
        %1245 = vmatpush1.msra.mxu0 0.0
        %1246 = vmatprep.subr.mxu0 0.0
        %1247 = vmatpush1.msra.mxu0 0.0
        %1248 = vmatprep.subr.mxu0 0.0
        %1249 = vmatpush1.msra.mxu0 0.0
        %1250 = vmatprep.mubr.f32.mxu0 0.0
        %1251 = vmatmul.mubr.f32.gmra.mrb[0].mxu0 %v1113
        %v1252 = vpop.f32.mrb[0].mxu0
        %v1253 = vadd.f32 0.0, %v1252
        %v1254 = vpop.f32.mrb[0].mxu0
        %1255 = vdwg.mxu0
        %v1257 = vlaneseq
        %v1258 = vshrl.u32 %v1257, 7
        %v1259 = vsub.s32 0, %v1258
        %v1260 = vrot.slane %v1110, %v1259
        %v1261 = vlaneseq
        %v1262 = vshrl.u32 %v1261, 7
        %v1263 = vsub.s32 1, %v1262
        %v1264 = vrot.slane %v1110, %v1263
        %v1265 = vlaneseq
        %v1266 = vshrl.u32 %v1265, 7
        %v1267 = vsub.s32 2, %v1266
        %v1268 = vrot.slane %v1110, %v1267
        %v1272 = vsub.f32 %v1260, %v1182
        %v1273 = vsub.f32 %v1264, %v1184
        %v1274 = vsub.f32 %v1268, %v1253
        %v1278 = vcombine.low %v1036, %v1038
        %v1280 = vunpack.c.l.s4 1966171168
        %v1281 = vunpack.c.0.s8 %v1280
        %v1282 = vlaneseq
        %v1283 = vshrl.u32 %v1282, 7
        %v1284 = vsub.s32 %v1281, %v1283
        %v1285 = vrot.slane %v1278, %v1284
        %v1287 = vunpack.c.l.s4 1966171168
        %v1288 = vunpack.c.0.s8 %v1287
        %v1289 = vlaneseq
        %v1290 = vshrl.u32 %v1289, 7
        %v1291 = vsub.s32 %v1288, %v1290
        %v1292 = vrot.slane %v1107, %v1291
        %v1293 = vcombine.low %v1285, %v1292
        %v1294 = vcombine.high %v1285, %v1292
        %v1296 = vunpack.c.l.s4 1966171168
        %v1297 = vunpack.c.0.s8 %v1296
        %v1298 = vlaneseq
        %v1299 = vshrl.u32 %v1298, 7
        %v1300 = vsub.s32 %v1297, %v1299
        %v1301 = vrot.slane %v1293, %v1300
        %v1303 = vunpack.c.l.s4 1966171168
        %v1304 = vunpack.c.0.s8 %v1303
        %v1305 = vlaneseq
        %v1306 = vshrl.u32 %v1305, 7
        %v1307 = vsub.s32 %v1304, %v1306
        %v1308 = vrot.slane %v1294, %v1307
        %v1309 = vlaneseq
        %v1310 = vshrl.u32 %v1309, 7
        %v1311 = vsub.s32 0, %v1310
        %v1312 = vrot.slane %v1301, %v1311
        %v1313 = vlaneseq
        %v1314 = vshrl.u32 %v1313, 7
        %v1315 = vsub.s32 1, %v1314
        %v1316 = vrot.slane %v1301, %v1315
        %v1317 = vlaneseq
        %v1318 = vshrl.u32 %v1317, 7
        %v1319 = vsub.s32 2, %v1318
        %v1320 = vrot.slane %v1301, %v1319
        %v1321 = vlaneseq
        %v1322 = vshrl.u32 %v1321, 7
        %v1323 = vsub.s32 0, %v1322
        %v1324 = vrot.slane %v1308, %v1323
        %v1325 = vlaneseq
        %v1326 = vshrl.u32 %v1325, 7
        %v1327 = vsub.s32 1, %v1326
        %v1328 = vrot.slane %v1308, %v1327
        %v1329 = vlaneseq
        %v1330 = vshrl.u32 %v1329, 7
        %v1331 = vsub.s32 2, %v1330
        %v1332 = vrot.slane %v1308, %v1331
        %v1339 = vmul.f32 %v462, %v1312
        %v1340 = vmul.f32 %v464, %v1316
        %v1341 = vmul.f32 %v505, %v1320
        %v1342 = vmul.f32 %v466, %v1324
        %v1343 = vmul.f32 %v468, %v1328
        %v1344 = vmul.f32 %v508, %v1332
        %v1348 = vcombine.low %v1272, %v1273
        %v1350 = vunpack.c.l.s4 1966171168
        %v1351 = vunpack.c.0.s8 %v1350
        %v1352 = vlaneseq
        %v1353 = vshrl.u32 %v1352, 7
        %v1354 = vsub.s32 %v1351, %v1353
        %v1355 = vrot.slane %v1348, %v1354
        %v1357 = vunpack.c.l.s4 1966171168
        %v1358 = vunpack.c.0.s8 %v1357
        %v1359 = vlaneseq
        %v1360 = vshrl.u32 %v1359, 7
        %v1361 = vsub.s32 %v1358, %v1360
        %v1362 = vrot.slane %v1274, %v1361
        %v1363 = vcombine.low %v1355, %v1362
        %v1364 = vcombine.high %v1355, %v1362
        %v1366 = vunpack.c.l.s4 1966171168
        %v1367 = vunpack.c.0.s8 %v1366
        %v1368 = vlaneseq
        %v1369 = vshrl.u32 %v1368, 7
        %v1370 = vsub.s32 %v1367, %v1369
        %v1371 = vrot.slane %v1363, %v1370
        %v1373 = vunpack.c.l.s4 1966171168
        %v1374 = vunpack.c.0.s8 %v1373
        %v1375 = vlaneseq
        %v1376 = vshrl.u32 %v1375, 7
        %v1377 = vsub.s32 %v1374, %v1376
        %v1378 = vrot.slane %v1364, %v1377
        %v1379 = vlaneseq
        %v1380 = vshrl.u32 %v1379, 7
        %v1381 = vsub.s32 0, %v1380
        %v1382 = vrot.slane %v1371, %v1381
        %v1383 = vlaneseq
        %v1384 = vshrl.u32 %v1383, 7
        %v1385 = vsub.s32 1, %v1384
        %v1386 = vrot.slane %v1371, %v1385
        %v1387 = vlaneseq
        %v1388 = vshrl.u32 %v1387, 7
        %v1389 = vsub.s32 2, %v1388
        %v1390 = vrot.slane %v1371, %v1389
        %v1391 = vlaneseq
        %v1392 = vshrl.u32 %v1391, 7
        %v1393 = vsub.s32 0, %v1392
        %v1394 = vrot.slane %v1378, %v1393
        %v1395 = vlaneseq
        %v1396 = vshrl.u32 %v1395, 7
        %v1397 = vsub.s32 1, %v1396
        %v1398 = vrot.slane %v1378, %v1397
        %v1399 = vlaneseq
        %v1400 = vshrl.u32 %v1399, 7
        %v1401 = vsub.s32 2, %v1400
        %v1402 = vrot.slane %v1378, %v1401
        %v1409 = vadd.f32 %v1339, %v1382
        %v1410 = vadd.f32 %v1340, %v1386
        %v1411 = vadd.f32 %v1341, %v1390
        %v1412 = vadd.f32 %v1342, %v1394
        %v1413 = vadd.f32 %v1343, %v1398
        %v1414 = vadd.f32 %v1344, %v1402
        %v1415 = vmul.f32 %v1409, 0.5
        %v1416 = vmul.f32 %v1410, 0.5
        %v1417 = vmul.f32 %v1411, 0.5
        %v1418 = vmul.f32 %v1412, 0.5
        %v1419 = vmul.f32 %v1413, 0.5
        %v1420 = vmul.f32 %v1414, 0.5
        %v1421 = vmul.f32 %v1409, %v1409
        %v1422 = vmul.f32 %v1410, %v1410
        %v1423 = vmul.f32 %v1411, %v1411
        %v1424 = vmul.f32 %v1412, %v1412
        %v1425 = vmul.f32 %v1413, %v1413
        %v1426 = vmul.f32 %v1414, %v1414
        %v1427 = vmul.f32 %v1421, %v1409
        %v1428 = vmul.f32 %v1422, %v1410
        %v1429 = vmul.f32 %v1423, %v1411
        %v1430 = vmul.f32 %v1424, %v1412
        %v1431 = vmul.f32 %v1425, %v1413
        %v1432 = vmul.f32 %v1426, %v1414
        %v1433 = vmul.f32 %v1427, 0.044715
        %v1434 = vmul.f32 %v1428, 0.044715
        %v1435 = vmul.f32 %v1429, 0.044715
        %v1436 = vmul.f32 %v1430, 0.044715
        %v1437 = vmul.f32 %v1431, 0.044715
        %v1438 = vmul.f32 %v1432, 0.044715
        %v1439 = vadd.f32 %v1409, %v1433
        %v1440 = vadd.f32 %v1410, %v1434
        %v1441 = vadd.f32 %v1411, %v1435
        %v1442 = vadd.f32 %v1412, %v1436
        %v1443 = vadd.f32 %v1413, %v1437
        %v1444 = vadd.f32 %v1414, %v1438
        %v1445 = vmul.f32 %v1439, 0.7978846
        %v1446 = vmul.f32 %v1440, 0.7978846
        %v1447 = vmul.f32 %v1441, 0.7978846
        %v1448 = vmul.f32 %v1442, 0.7978846
        %v1449 = vmul.f32 %v1443, 0.7978846
        %v1450 = vmul.f32 %v1444, 0.7978846
        %v1451 = vtanh.pop %v1445
        %v1452 = vtanh.pop %v1446
        %v1453 = vtanh.pop %v1447
        %v1454 = vtanh.pop %v1448
        %v1455 = vtanh.pop %v1449
        %v1456 = vtanh.pop %v1450
        %v1457 = vadd.f32 %v1451, 1.0
        %v1458 = vadd.f32 %v1452, 1.0
        %v1459 = vadd.f32 %v1453, 1.0
        %v1460 = vadd.f32 %v1454, 1.0
        %v1461 = vadd.f32 %v1455, 1.0
        %v1462 = vadd.f32 %v1456, 1.0
        %v1463 = vmul.f32 %v1415, %v1457
        %v1464 = vmul.f32 %v1416, %v1458
        %v1465 = vmul.f32 %v1417, %v1459
        %v1466 = vmul.f32 %v1418, %v1460
        %v1467 = vmul.f32 %v1419, %v1461
        %v1468 = vmul.f32 %v1420, %v1462
        %v1469 = vpack.c.bf16 %v1466, %v1463
        %v1470 = vpack.c.bf16 %v1467, %v1464
        %v1471 = vpack.c.bf16 %v1468, %v1465
        %v1472 = vld [vmem:[#allocation2] sm:$0xff]
        %v1473 = vld [vmem:[#allocation2 + $0x8] sm:$0xff]
        %v1474 = vld [vmem:[#allocation2 + $0x10] sm:$0xff]
        %v1475 = vld [vmem:[#allocation2 + $0x18] sm:$0xff]
        %v1476 = vld [vmem:[#allocation2 + $0x20] sm:$0xff]
        %v1477 = vld [vmem:[#allocation2 + $0x28] sm:$0xff]
        %v1478 = vld [vmem:[#allocation2 + $0x30] sm:$0xff]
        %v1479 = vld [vmem:[#allocation2 + $0x38] sm:$0xff]
        %v1480 = vld [vmem:[#allocation2 + $0x40] sm:$0xff]
        %v1481 = vld [vmem:[#allocation2 + $0x48] sm:$0xff]
        %v1482 = vld [vmem:[#allocation2 + $0x50] sm:$0xff]
        %v1483 = vld [vmem:[#allocation2 + $0x58] sm:$0xff]
        %v1484 = vld [vmem:[#allocation2 + $0x60] sm:$0xff]
        %v1485 = vld [vmem:[#allocation2 + $0x68] sm:$0xff]
        %v1486 = vld [vmem:[#allocation2 + $0x70] sm:$0xff]
        %v1487 = vld [vmem:[#allocation2 + $0x78] sm:$0xff]
        %v1488 = vld [vmem:[#allocation2 + $0x80] sm:$0xff]
        %v1489 = vld [vmem:[#allocation2 + $0x88] sm:$0xff]
        %v1490 = vld [vmem:[#allocation2 + $0x90] sm:$0xff]
        %v1491 = vld [vmem:[#allocation2 + $0x98] sm:$0xff]
        %v1492 = vld [vmem:[#allocation2 + $0xa0] sm:$0xff]
        %v1493 = vld [vmem:[#allocation2 + $0xa8] sm:$0xff]
        %v1494 = vld [vmem:[#allocation2 + $0xb0] sm:$0xff]
        %v1495 = vld [vmem:[#allocation2 + $0xb8] sm:$0xff]
        %v1496 = vld [vmem:[#allocation2 + $0xc0] sm:$0xff]
        %v1497 = vld [vmem:[#allocation2 + $0xc8] sm:$0xff]
        %v1498 = vld [vmem:[#allocation2 + $0xd0] sm:$0xff]
        %v1499 = vld [vmem:[#allocation2 + $0xd8] sm:$0xff]
        %v1500 = vld [vmem:[#allocation2 + $0xe0] sm:$0xff]
        %v1501 = vld [vmem:[#allocation2 + $0xe8] sm:$0xff]
        %v1502 = vld [vmem:[#allocation2 + $0xf0] sm:$0xff]
        %v1503 = vld [vmem:[#allocation2 + $0xf8] sm:$0xff]
        %v1504 = vld [vmem:[#allocation2 + $0x100] sm:$0xff]
        %v1505 = vld [vmem:[#allocation2 + $0x108] sm:$0xff]
        %v1506 = vld [vmem:[#allocation2 + $0x110] sm:$0xff]
        %v1507 = vld [vmem:[#allocation2 + $0x118] sm:$0xff]
        %v1508 = vld [vmem:[#allocation2 + $0x120] sm:$0xff]
        %v1509 = vld [vmem:[#allocation2 + $0x128] sm:$0xff]
        %v1510 = vld [vmem:[#allocation2 + $0x130] sm:$0xff]
        %v1511 = vld [vmem:[#allocation2 + $0x138] sm:$0xff]
        %v1512 = vld [vmem:[#allocation2 + $0x140] sm:$0xff]
        %v1513 = vld [vmem:[#allocation2 + $0x148] sm:$0xff]
        %v1514 = vld [vmem:[#allocation2 + $0x150] sm:$0xff]
        %v1515 = vld [vmem:[#allocation2 + $0x158] sm:$0xff]
        %v1516 = vld [vmem:[#allocation2 + $0x160] sm:$0xff]
        %v1517 = vld [vmem:[#allocation2 + $0x168] sm:$0xff]
        %v1518 = vld [vmem:[#allocation2 + $0x170] sm:$0xff]
        %v1519 = vld [vmem:[#allocation2 + $0x178] sm:$0xff]
        %v1520 = vld [vmem:[#allocation2 + $0x180] sm:$0xff]
        %v1521 = vld [vmem:[#allocation2 + $0x188] sm:$0xff]
        %v1522 = vld [vmem:[#allocation2 + $0x190] sm:$0xff]
        %v1523 = vld [vmem:[#allocation2 + $0x198] sm:$0xff]
        %v1524 = vld [vmem:[#allocation2 + $0x1a0] sm:$0xff]
        %v1525 = vld [vmem:[#allocation2 + $0x1a8] sm:$0xff]
        %v1526 = vld [vmem:[#allocation2 + $0x1b0] sm:$0xff]
        %v1527 = vld [vmem:[#allocation2 + $0x1b8] sm:$0xff]
        %v1528 = vld [vmem:[#allocation2 + $0x1c0] sm:$0xff]
        %v1529 = vld [vmem:[#allocation2 + $0x1c8] sm:$0xff]
        %v1530 = vld [vmem:[#allocation2 + $0x1d0] sm:$0xff]
        %v1531 = vld [vmem:[#allocation2 + $0x1d8] sm:$0xff]
        %v1532 = vld [vmem:[#allocation2 + $0x1e0] sm:$0xff]
        %v1533 = vld [vmem:[#allocation2 + $0x1e8] sm:$0xff]
        %v1534 = vld [vmem:[#allocation2 + $0x1f0] sm:$0xff]
        %v1535 = vld [vmem:[#allocation2 + $0x1f8] sm:$0xff]
        %v1536 = vld [vmem:[#allocation2 + $0x200] sm:$0xff]
        %v1537 = vld [vmem:[#allocation2 + $0x208] sm:$0xff]
        %v1538 = vld [vmem:[#allocation2 + $0x210] sm:$0xff]
        %v1539 = vld [vmem:[#allocation2 + $0x218] sm:$0xff]
        %v1540 = vld [vmem:[#allocation2 + $0x220] sm:$0xff]
        %v1541 = vld [vmem:[#allocation2 + $0x228] sm:$0xff]
        %v1542 = vld [vmem:[#allocation2 + $0x230] sm:$0xff]
        %v1543 = vld [vmem:[#allocation2 + $0x238] sm:$0xff]
        %v1544 = vld [vmem:[#allocation2 + $0x240] sm:$0xff]
        %v1545 = vld [vmem:[#allocation2 + $0x248] sm:$0xff]
        %v1546 = vld [vmem:[#allocation2 + $0x250] sm:$0xff]
        %v1547 = vld [vmem:[#allocation2 + $0x258] sm:$0xff]
        %v1548 = vld [vmem:[#allocation2 + $0x260] sm:$0xff]
        %v1549 = vld [vmem:[#allocation2 + $0x268] sm:$0xff]
        %v1550 = vld [vmem:[#allocation2 + $0x270] sm:$0xff]
        %v1551 = vld [vmem:[#allocation2 + $0x278] sm:$0xff]
        %v1552 = vld [vmem:[#allocation2 + $0x280] sm:$0xff]
        %v1553 = vld [vmem:[#allocation2 + $0x288] sm:$0xff]
        %v1554 = vld [vmem:[#allocation2 + $0x290] sm:$0xff]
        %v1555 = vld [vmem:[#allocation2 + $0x298] sm:$0xff]
        %v1556 = vld [vmem:[#allocation2 + $0x2a0] sm:$0xff]
        %v1557 = vld [vmem:[#allocation2 + $0x2a8] sm:$0xff]
        %v1558 = vld [vmem:[#allocation2 + $0x2b0] sm:$0xff]
        %v1559 = vld [vmem:[#allocation2 + $0x2b8] sm:$0xff]
        %v1560 = vld [vmem:[#allocation2 + $0x2c0] sm:$0xff]
        %v1561 = vld [vmem:[#allocation2 + $0x2c8] sm:$0xff]
        %v1562 = vld [vmem:[#allocation2 + $0x2d0] sm:$0xff]
        %v1563 = vld [vmem:[#allocation2 + $0x2d8] sm:$0xff]
        %v1564 = vld [vmem:[#allocation2 + $0x2e0] sm:$0xff]
        %v1565 = vld [vmem:[#allocation2 + $0x2e8] sm:$0xff]
        %v1566 = vld [vmem:[#allocation2 + $0x2f0] sm:$0xff]
        %v1567 = vld [vmem:[#allocation2 + $0x2f8] sm:$0xff]
        %v1568 = vld [vmem:[%s6] sm:$0xf]
        %v1570 = vlaneseq
        %v1571 = vshrl.u32 %v1570, 7
        %v1572 = vsub.s32 0, %v1571
        %v1573 = vrot.slane %v1568, %v1572
        %v1574 = vlaneseq
        %v1575 = vshrl.u32 %v1574, 7
        %v1576 = vsub.s32 1, %v1575
        %v1577 = vrot.slane %v1568, %v1576
        %v1578 = vlaneseq
        %v1579 = vshrl.u32 %v1578, 7
        %v1580 = vsub.s32 2, %v1579
        %v1581 = vrot.slane %v1568, %v1580
        %v1582 = vlaneseq
        %v1583 = vshrl.u32 %v1582, 7
        %v1584 = vsub.s32 3, %v1583
        %v1585 = vrot.slane %v1568, %v1584
        %v1686 = vunpack.c.l.b16 %v1472
        %v1687 = vunpack.c.h.b16 %v1472
        %v1688 = vunpack.c.l.b16 %v1473
        %v1689 = vunpack.c.h.b16 %v1473
        %v1690 = vunpack.c.l.b16 %v1474
        %v1691 = vunpack.c.h.b16 %v1474
        %v1692 = vunpack.c.l.b16 %v1475
        %v1693 = vunpack.c.h.b16 %v1475
        %v1694 = vunpack.c.l.b16 %v1476
        %v1695 = vunpack.c.h.b16 %v1476
        %v1696 = vunpack.c.l.b16 %v1477
        %v1697 = vunpack.c.h.b16 %v1477
        %v1698 = vunpack.c.l.b16 %v1478
        %v1699 = vunpack.c.h.b16 %v1478
        %v1700 = vunpack.c.l.b16 %v1479
        %v1701 = vunpack.c.h.b16 %v1479
        %v1702 = vunpack.c.l.b16 %v1480
        %v1703 = vunpack.c.h.b16 %v1480
        %v1704 = vunpack.c.l.b16 %v1481
        %v1705 = vunpack.c.h.b16 %v1481
        %v1706 = vunpack.c.l.b16 %v1482
        %v1707 = vunpack.c.h.b16 %v1482
        %v1708 = vunpack.c.l.b16 %v1483
        %v1709 = vunpack.c.h.b16 %v1483
        %v1710 = vunpack.c.l.b16 %v1484
        %v1711 = vunpack.c.h.b16 %v1484
        %v1712 = vunpack.c.l.b16 %v1485
        %v1713 = vunpack.c.h.b16 %v1485
        %v1714 = vunpack.c.l.b16 %v1486
        %v1715 = vunpack.c.h.b16 %v1486
        %v1716 = vunpack.c.l.b16 %v1487
        %v1717 = vunpack.c.h.b16 %v1487
        %v1718 = vunpack.c.l.b16 %v1488
        %v1719 = vunpack.c.h.b16 %v1488
        %v1720 = vunpack.c.l.b16 %v1489
        %v1721 = vunpack.c.h.b16 %v1489
        %v1722 = vunpack.c.l.b16 %v1490
        %v1723 = vunpack.c.h.b16 %v1490
        %v1724 = vunpack.c.l.b16 %v1491
        %v1725 = vunpack.c.h.b16 %v1491
        %v1726 = vunpack.c.l.b16 %v1492
        %v1727 = vunpack.c.h.b16 %v1492
        %v1728 = vunpack.c.l.b16 %v1493
        %v1729 = vunpack.c.h.b16 %v1493
        %v1730 = vunpack.c.l.b16 %v1494
        %v1731 = vunpack.c.h.b16 %v1494
        %v1732 = vunpack.c.l.b16 %v1495
        %v1733 = vunpack.c.h.b16 %v1495
        %v1734 = vunpack.c.l.b16 %v1496
        %v1735 = vunpack.c.h.b16 %v1496
        %v1736 = vunpack.c.l.b16 %v1497
        %v1737 = vunpack.c.h.b16 %v1497
        %v1738 = vunpack.c.l.b16 %v1498
        %v1739 = vunpack.c.h.b16 %v1498
        %v1740 = vunpack.c.l.b16 %v1499
        %v1741 = vunpack.c.h.b16 %v1499
        %v1742 = vunpack.c.l.b16 %v1500
        %v1743 = vunpack.c.h.b16 %v1500
        %v1744 = vunpack.c.l.b16 %v1501
        %v1745 = vunpack.c.h.b16 %v1501
        %v1746 = vunpack.c.l.b16 %v1502
        %v1747 = vunpack.c.h.b16 %v1502
        %v1748 = vunpack.c.l.b16 %v1503
        %v1749 = vunpack.c.h.b16 %v1503
        %v1750 = vunpack.c.l.b16 %v1504
        %v1751 = vunpack.c.h.b16 %v1504
        %v1752 = vunpack.c.l.b16 %v1505
        %v1753 = vunpack.c.h.b16 %v1505
        %v1754 = vunpack.c.l.b16 %v1506
        %v1755 = vunpack.c.h.b16 %v1506
        %v1756 = vunpack.c.l.b16 %v1507
        %v1757 = vunpack.c.h.b16 %v1507
        %v1758 = vunpack.c.l.b16 %v1508
        %v1759 = vunpack.c.h.b16 %v1508
        %v1760 = vunpack.c.l.b16 %v1509
        %v1761 = vunpack.c.h.b16 %v1509
        %v1762 = vunpack.c.l.b16 %v1510
        %v1763 = vunpack.c.h.b16 %v1510
        %v1764 = vunpack.c.l.b16 %v1511
        %v1765 = vunpack.c.h.b16 %v1511
        %v1766 = vunpack.c.l.b16 %v1512
        %v1767 = vunpack.c.h.b16 %v1512
        %v1768 = vunpack.c.l.b16 %v1513
        %v1769 = vunpack.c.h.b16 %v1513
        %v1770 = vunpack.c.l.b16 %v1514
        %v1771 = vunpack.c.h.b16 %v1514
        %v1772 = vunpack.c.l.b16 %v1515
        %v1773 = vunpack.c.h.b16 %v1515
        %v1774 = vunpack.c.l.b16 %v1516
        %v1775 = vunpack.c.h.b16 %v1516
        %v1776 = vunpack.c.l.b16 %v1517
        %v1777 = vunpack.c.h.b16 %v1517
        %v1778 = vunpack.c.l.b16 %v1518
        %v1779 = vunpack.c.h.b16 %v1518
        %v1780 = vunpack.c.l.b16 %v1519
        %v1781 = vunpack.c.h.b16 %v1519
        %v1782 = vunpack.c.l.b16 %v1520
        %v1783 = vunpack.c.h.b16 %v1520
        %v1784 = vunpack.c.l.b16 %v1521
        %v1785 = vunpack.c.h.b16 %v1521
        %v1786 = vunpack.c.l.b16 %v1522
        %v1787 = vunpack.c.h.b16 %v1522
        %v1788 = vunpack.c.l.b16 %v1523
        %v1789 = vunpack.c.h.b16 %v1523
        %v1790 = vunpack.c.l.b16 %v1524
        %v1791 = vunpack.c.h.b16 %v1524
        %v1792 = vunpack.c.l.b16 %v1525
        %v1793 = vunpack.c.h.b16 %v1525
        %v1794 = vunpack.c.l.b16 %v1526
        %v1795 = vunpack.c.h.b16 %v1526
        %v1796 = vunpack.c.l.b16 %v1527
        %v1797 = vunpack.c.h.b16 %v1527
        %v1798 = vunpack.c.l.b16 %v1528
        %v1799 = vunpack.c.h.b16 %v1528
        %v1800 = vunpack.c.l.b16 %v1529
        %v1801 = vunpack.c.h.b16 %v1529
        %v1802 = vunpack.c.l.b16 %v1530
        %v1803 = vunpack.c.h.b16 %v1530
        %v1804 = vunpack.c.l.b16 %v1531
        %v1805 = vunpack.c.h.b16 %v1531
        %v1806 = vunpack.c.l.b16 %v1532
        %v1807 = vunpack.c.h.b16 %v1532
        %v1808 = vunpack.c.l.b16 %v1533
        %v1809 = vunpack.c.h.b16 %v1533
        %v1810 = vunpack.c.l.b16 %v1534
        %v1811 = vunpack.c.h.b16 %v1534
        %v1812 = vunpack.c.l.b16 %v1535
        %v1813 = vunpack.c.h.b16 %v1535
        %v1814 = vunpack.c.l.b16 %v1536
        %v1815 = vunpack.c.h.b16 %v1536
        %v1816 = vunpack.c.l.b16 %v1537
        %v1817 = vunpack.c.h.b16 %v1537
        %v1818 = vunpack.c.l.b16 %v1538
        %v1819 = vunpack.c.h.b16 %v1538
        %v1820 = vunpack.c.l.b16 %v1539
        %v1821 = vunpack.c.h.b16 %v1539
        %v1822 = vunpack.c.l.b16 %v1540
        %v1823 = vunpack.c.h.b16 %v1540
        %v1824 = vunpack.c.l.b16 %v1541
        %v1825 = vunpack.c.h.b16 %v1541
        %v1826 = vunpack.c.l.b16 %v1542
        %v1827 = vunpack.c.h.b16 %v1542
        %v1828 = vunpack.c.l.b16 %v1543
        %v1829 = vunpack.c.h.b16 %v1543
        %v1830 = vunpack.c.l.b16 %v1544
        %v1831 = vunpack.c.h.b16 %v1544
        %v1832 = vunpack.c.l.b16 %v1545
        %v1833 = vunpack.c.h.b16 %v1545
        %v1834 = vunpack.c.l.b16 %v1546
        %v1835 = vunpack.c.h.b16 %v1546
        %v1836 = vunpack.c.l.b16 %v1547
        %v1837 = vunpack.c.h.b16 %v1547
        %v1838 = vunpack.c.l.b16 %v1548
        %v1839 = vunpack.c.h.b16 %v1548
        %v1840 = vunpack.c.l.b16 %v1549
        %v1841 = vunpack.c.h.b16 %v1549
        %v1842 = vunpack.c.l.b16 %v1550
        %v1843 = vunpack.c.h.b16 %v1550
        %v1844 = vunpack.c.l.b16 %v1551
        %v1845 = vunpack.c.h.b16 %v1551
        %v1846 = vunpack.c.l.b16 %v1552
        %v1847 = vunpack.c.h.b16 %v1552
        %v1848 = vunpack.c.l.b16 %v1553
        %v1849 = vunpack.c.h.b16 %v1553
        %v1850 = vunpack.c.l.b16 %v1554
        %v1851 = vunpack.c.h.b16 %v1554
        %v1852 = vunpack.c.l.b16 %v1555
        %v1853 = vunpack.c.h.b16 %v1555
        %v1854 = vunpack.c.l.b16 %v1556
        %v1855 = vunpack.c.h.b16 %v1556
        %v1856 = vunpack.c.l.b16 %v1557
        %v1857 = vunpack.c.h.b16 %v1557
        %v1858 = vunpack.c.l.b16 %v1558
        %v1859 = vunpack.c.h.b16 %v1558
        %v1860 = vunpack.c.l.b16 %v1559
        %v1861 = vunpack.c.h.b16 %v1559
        %v1862 = vunpack.c.l.b16 %v1560
        %v1863 = vunpack.c.h.b16 %v1560
        %v1864 = vunpack.c.l.b16 %v1561
        %v1865 = vunpack.c.h.b16 %v1561
        %v1866 = vunpack.c.l.b16 %v1562
        %v1867 = vunpack.c.h.b16 %v1562
        %v1868 = vunpack.c.l.b16 %v1563
        %v1869 = vunpack.c.h.b16 %v1563
        %v1870 = vunpack.c.l.b16 %v1564
        %v1871 = vunpack.c.h.b16 %v1564
        %v1872 = vunpack.c.l.b16 %v1565
        %v1873 = vunpack.c.h.b16 %v1565
        %v1874 = vunpack.c.l.b16 %v1566
        %v1875 = vunpack.c.h.b16 %v1566
        %v1876 = vunpack.c.l.b16 %v1567
        %v1877 = vunpack.c.h.b16 %v1567
        %v1878 = vpack.c.b16 %v1690, %v1686
        %v1879 = vpack.c.b16 %v1691, %v1687
        %v1880 = vpack.c.b16 %v1692, %v1688
        %v1881 = vpack.c.b16 %v1693, %v1689
        %v1882 = vpack.c.b16 %v1698, %v1694
        %v1883 = vpack.c.b16 %v1699, %v1695
        %v1884 = vpack.c.b16 %v1700, %v1696
        %v1885 = vpack.c.b16 %v1701, %v1697
        %v1886 = vpack.c.b16 %v1706, %v1702
        %v1887 = vpack.c.b16 %v1707, %v1703
        %v1888 = vpack.c.b16 %v1708, %v1704
        %v1889 = vpack.c.b16 %v1709, %v1705
        %v1890 = vpack.c.b16 %v1714, %v1710
        %v1891 = vpack.c.b16 %v1715, %v1711
        %v1892 = vpack.c.b16 %v1716, %v1712
        %v1893 = vpack.c.b16 %v1717, %v1713
        %v1894 = vpack.c.b16 %v1722, %v1718
        %v1895 = vpack.c.b16 %v1723, %v1719
        %v1896 = vpack.c.b16 %v1724, %v1720
        %v1897 = vpack.c.b16 %v1725, %v1721
        %v1898 = vpack.c.b16 %v1730, %v1726
        %v1899 = vpack.c.b16 %v1731, %v1727
        %v1900 = vpack.c.b16 %v1732, %v1728
        %v1901 = vpack.c.b16 %v1733, %v1729
        %v1902 = vpack.c.b16 %v1738, %v1734
        %v1903 = vpack.c.b16 %v1739, %v1735
        %v1904 = vpack.c.b16 %v1740, %v1736
        %v1905 = vpack.c.b16 %v1741, %v1737
        %v1906 = vpack.c.b16 %v1746, %v1742
        %v1907 = vpack.c.b16 %v1747, %v1743
        %v1908 = vpack.c.b16 %v1748, %v1744
        %v1909 = vpack.c.b16 %v1749, %v1745
        %v1910 = vpack.c.b16 %v1754, %v1750
        %v1911 = vpack.c.b16 %v1755, %v1751
        %v1912 = vpack.c.b16 %v1756, %v1752
        %v1913 = vpack.c.b16 %v1757, %v1753
        %v1914 = vpack.c.b16 %v1762, %v1758
        %v1915 = vpack.c.b16 %v1763, %v1759
        %v1916 = vpack.c.b16 %v1764, %v1760
        %v1917 = vpack.c.b16 %v1765, %v1761
        %v1918 = vpack.c.b16 %v1770, %v1766
        %v1919 = vpack.c.b16 %v1771, %v1767
        %v1920 = vpack.c.b16 %v1772, %v1768
        %v1921 = vpack.c.b16 %v1773, %v1769
        %v1922 = vpack.c.b16 %v1778, %v1774
        %v1923 = vpack.c.b16 %v1779, %v1775
        %v1924 = vpack.c.b16 %v1780, %v1776
        %v1925 = vpack.c.b16 %v1781, %v1777
        %v1926 = vpack.c.b16 %v1786, %v1782
        %v1927 = vpack.c.b16 %v1787, %v1783
        %v1928 = vpack.c.b16 %v1788, %v1784
        %v1929 = vpack.c.b16 %v1789, %v1785
        %v1930 = vpack.c.b16 %v1794, %v1790
        %v1931 = vpack.c.b16 %v1795, %v1791
        %v1932 = vpack.c.b16 %v1796, %v1792
        %v1933 = vpack.c.b16 %v1797, %v1793
        %v1934 = vpack.c.b16 %v1802, %v1798
        %v1935 = vpack.c.b16 %v1803, %v1799
        %v1936 = vpack.c.b16 %v1804, %v1800
        %v1937 = vpack.c.b16 %v1805, %v1801
        %v1938 = vpack.c.b16 %v1810, %v1806
        %v1939 = vpack.c.b16 %v1811, %v1807
        %v1940 = vpack.c.b16 %v1812, %v1808
        %v1941 = vpack.c.b16 %v1813, %v1809
        %v1942 = vpack.c.b16 %v1818, %v1814
        %v1943 = vpack.c.b16 %v1819, %v1815
        %v1944 = vpack.c.b16 %v1820, %v1816
        %v1945 = vpack.c.b16 %v1821, %v1817
        %v1946 = vpack.c.b16 %v1826, %v1822
        %v1947 = vpack.c.b16 %v1827, %v1823
        %v1948 = vpack.c.b16 %v1828, %v1824
        %v1949 = vpack.c.b16 %v1829, %v1825
        %v1950 = vpack.c.b16 %v1834, %v1830
        %v1951 = vpack.c.b16 %v1835, %v1831
        %v1952 = vpack.c.b16 %v1836, %v1832
        %v1953 = vpack.c.b16 %v1837, %v1833
        %v1954 = vpack.c.b16 %v1842, %v1838
        %v1955 = vpack.c.b16 %v1843, %v1839
        %v1956 = vpack.c.b16 %v1844, %v1840
        %v1957 = vpack.c.b16 %v1845, %v1841
        %v1958 = vpack.c.b16 %v1850, %v1846
        %v1959 = vpack.c.b16 %v1851, %v1847
        %v1960 = vpack.c.b16 %v1852, %v1848
        %v1961 = vpack.c.b16 %v1853, %v1849
        %v1962 = vpack.c.b16 %v1858, %v1854
        %v1963 = vpack.c.b16 %v1859, %v1855
        %v1964 = vpack.c.b16 %v1860, %v1856
        %v1965 = vpack.c.b16 %v1861, %v1857
        %v1966 = vpack.c.b16 %v1866, %v1862
        %v1967 = vpack.c.b16 %v1867, %v1863
        %v1968 = vpack.c.b16 %v1868, %v1864
        %v1969 = vpack.c.b16 %v1869, %v1865
        %v1970 = vpack.c.b16 %v1874, %v1870
        %v1971 = vpack.c.b16 %v1875, %v1871
        %v1972 = vpack.c.b16 %v1876, %v1872
        %v1973 = vpack.c.b16 %v1877, %v1873
        %2070 = vmatprep.subr.bf16.mxu0 %v1879
        %2071 = vmatpush1.bf16.msra.mxu0 %v1878
        %2072 = vmatprep.subr.bf16.mxu0 %v1883
        %2073 = vmatpush1.bf16.msra.mxu0 %v1882
        %2074 = vmatprep.subr.bf16.mxu0 %v1887
        %2075 = vmatpush1.bf16.msra.mxu0 %v1886
        %2076 = vmatprep.subr.bf16.mxu0 %v1891
        %2077 = vmatpush1.bf16.msra.mxu0 %v1890
        %2078 = vmatprep.subr.bf16.mxu0 %v1895
        %2079 = vmatpush1.bf16.msra.mxu0 %v1894
        %2080 = vmatprep.subr.bf16.mxu0 %v1899
        %2081 = vmatpush1.bf16.msra.mxu0 %v1898
        %2082 = vmatprep.subr.bf16.mxu0 %v1903
        %2083 = vmatpush1.bf16.msra.mxu0 %v1902
        %2084 = vmatprep.subr.bf16.mxu0 %v1907
        %2085 = vmatpush1.bf16.msra.mxu0 %v1906
        %2086 = vmatprep.subr.bf16.mxu0 %v1911
        %2087 = vmatpush1.bf16.msra.mxu0 %v1910
        %2088 = vmatprep.subr.bf16.mxu0 %v1915
        %2089 = vmatpush1.bf16.msra.mxu0 %v1914
        %2090 = vmatprep.subr.bf16.mxu0 %v1919
        %2091 = vmatpush1.bf16.msra.mxu0 %v1918
        %2092 = vmatprep.subr.bf16.mxu0 %v1923
        %2093 = vmatpush1.bf16.msra.mxu0 %v1922
        %2094 = vmatprep.subr.bf16.mxu0 %v1927
        %2095 = vmatpush1.bf16.msra.mxu0 %v1926
        %2096 = vmatprep.subr.bf16.mxu0 %v1931
        %2097 = vmatpush1.bf16.msra.mxu0 %v1930
        %2098 = vmatprep.subr.bf16.mxu0 %v1935
        %2099 = vmatpush1.bf16.msra.mxu0 %v1934
        %2100 = vmatprep.subr.bf16.mxu0 %v1939
        %2101 = vmatpush1.bf16.msra.mxu0 %v1938
        %2102 = vmatprep.mubr.bf16.mxu0 %v1470
        %2103 = vmatmul.mubr.bf16.gmra.mrb[0].mxu0 %v1469
        %v2104 = vpop.f32.mrb[0].mxu0
        %v2105 = vadd.f32 %v1573, %v2104
        %v2106 = vpop.f32.mrb[0].mxu0
        %v2107 = vadd.f32 %v1577, %v2106
        %v2108 = vpop.f32.mrb[0].mxu0
        %v2109 = vadd.f32 %v1573, %v2108
        %v2110 = vpop.f32.mrb[0].mxu0
        %v2111 = vadd.f32 %v1577, %v2110
        %2112 = vdwg.mxu0
        %2113 = vmatprep.subr.bf16.mxu0 %v1943
        %2114 = vmatpush1.bf16.msra.mxu0 %v1942
        %2115 = vmatprep.subr.bf16.mxu0 %v1947
        %2116 = vmatpush1.bf16.msra.mxu0 %v1946
        %2117 = vmatprep.subr.bf16.mxu0 %v1951
        %2118 = vmatpush1.bf16.msra.mxu0 %v1950
        %2119 = vmatprep.subr.bf16.mxu0 %v1955
        %2120 = vmatpush1.bf16.msra.mxu0 %v1954
        %2121 = vmatprep.subr.bf16.mxu0 %v1959
        %2122 = vmatpush1.bf16.msra.mxu0 %v1958
        %2123 = vmatprep.subr.bf16.mxu0 %v1963
        %2124 = vmatpush1.bf16.msra.mxu0 %v1962
        %2125 = vmatprep.subr.bf16.mxu0 %v1967
        %2126 = vmatpush1.bf16.msra.mxu0 %v1966
        %2127 = vmatprep.subr.bf16.mxu0 %v1971
        %2128 = vmatpush1.bf16.msra.mxu0 %v1970
        %2129 = vmatprep.subr.bf16.mxu0 0
        %2130 = vmatpush1.bf16.msra.mxu0 0
        %2131 = vmatprep.subr.bf16.mxu0 0
        %2132 = vmatpush1.bf16.msra.mxu0 0
        %2133 = vmatprep.subr.bf16.mxu0 0
        %2134 = vmatpush1.bf16.msra.mxu0 0
        %2135 = vmatprep.subr.bf16.mxu0 0
        %2136 = vmatpush1.bf16.msra.mxu0 0
        %2137 = vmatprep.subr.bf16.mxu0 0
        %2138 = vmatpush1.bf16.msra.mxu0 0
        %2139 = vmatprep.subr.bf16.mxu0 0
        %2140 = vmatpush1.bf16.msra.mxu0 0
        %2141 = vmatprep.subr.bf16.mxu0 0
        %2142 = vmatpush1.bf16.msra.mxu0 0
        %2143 = vmatprep.subr.bf16.mxu0 0
        %2144 = vmatpush1.bf16.msra.mxu0 0
        %2145 = vmatprep.mubr.bf16.mxu0 0
        %2146 = vmatmul.mubr.bf16.gmra.mrb[0].mxu0 %v1471
        %v2147 = vpop.f32.mrb[0].mxu0
        %v2148 = vadd.f32 %v2105, %v2147
        %v2149 = vpop.f32.mrb[0].mxu0
        %v2150 = vadd.f32 %v2107, %v2149
        %v2151 = vpop.f32.mrb[0].mxu0
        %v2152 = vadd.f32 %v2109, %v2151
        %v2153 = vpop.f32.mrb[0].mxu0
        %v2154 = vadd.f32 %v2111, %v2153
        %2155 = vdwg.mxu0
        %2156 = vmatprep.subr.bf16.mxu0 %v1881
        %2157 = vmatpush1.bf16.msra.mxu0 %v1880
        %2158 = vmatprep.subr.bf16.mxu0 %v1885
        %2159 = vmatpush1.bf16.msra.mxu0 %v1884
        %2160 = vmatprep.subr.bf16.mxu0 %v1889
        %2161 = vmatpush1.bf16.msra.mxu0 %v1888
        %2162 = vmatprep.subr.bf16.mxu0 %v1893
        %2163 = vmatpush1.bf16.msra.mxu0 %v1892
        %2164 = vmatprep.subr.bf16.mxu0 %v1897
        %2165 = vmatpush1.bf16.msra.mxu0 %v1896
        %2166 = vmatprep.subr.bf16.mxu0 %v1901
        %2167 = vmatpush1.bf16.msra.mxu0 %v1900
        %2168 = vmatprep.subr.bf16.mxu0 %v1905
        %2169 = vmatpush1.bf16.msra.mxu0 %v1904
        %2170 = vmatprep.subr.bf16.mxu0 %v1909
        %2171 = vmatpush1.bf16.msra.mxu0 %v1908
        %2172 = vmatprep.subr.bf16.mxu0 %v1913
        %2173 = vmatpush1.bf16.msra.mxu0 %v1912
        %2174 = vmatprep.subr.bf16.mxu0 %v1917
        %2175 = vmatpush1.bf16.msra.mxu0 %v1916
        %2176 = vmatprep.subr.bf16.mxu0 %v1921
        %2177 = vmatpush1.bf16.msra.mxu0 %v1920
        %2178 = vmatprep.subr.bf16.mxu0 %v1925
        %2179 = vmatpush1.bf16.msra.mxu0 %v1924
        %2180 = vmatprep.subr.bf16.mxu0 %v1929
        %2181 = vmatpush1.bf16.msra.mxu0 %v1928
        %2182 = vmatprep.subr.bf16.mxu0 %v1933
        %2183 = vmatpush1.bf16.msra.mxu0 %v1932
        %2184 = vmatprep.subr.bf16.mxu0 %v1937
        %2185 = vmatpush1.bf16.msra.mxu0 %v1936
        %2186 = vmatprep.subr.bf16.mxu0 %v1941
        %2187 = vmatpush1.bf16.msra.mxu0 %v1940
        %2188 = vmatprep.mubr.bf16.mxu0 %v1470
        %2189 = vmatmul.mubr.bf16.gmra.mrb[0].mxu0 %v1469
        %v2190 = vpop.f32.mrb[0].mxu0
        %v2191 = vadd.f32 %v1581, %v2190
        %v2192 = vpop.f32.mrb[0].mxu0
        %v2193 = vadd.f32 %v1585, %v2192
        %v2194 = vpop.f32.mrb[0].mxu0
        %v2195 = vadd.f32 %v1581, %v2194
        %v2196 = vpop.f32.mrb[0].mxu0
        %v2197 = vadd.f32 %v1585, %v2196
        %2198 = vdwg.mxu0
        %2199 = vmatprep.subr.bf16.mxu0 %v1945
        %2200 = vmatpush1.bf16.msra.mxu0 %v1944
        %2201 = vmatprep.subr.bf16.mxu0 %v1949
        %2202 = vmatpush1.bf16.msra.mxu0 %v1948
        %2203 = vmatprep.subr.bf16.mxu0 %v1953
        %2204 = vmatpush1.bf16.msra.mxu0 %v1952
        %2205 = vmatprep.subr.bf16.mxu0 %v1957
        %2206 = vmatpush1.bf16.msra.mxu0 %v1956
        %2207 = vmatprep.subr.bf16.mxu0 %v1961
        %2208 = vmatpush1.bf16.msra.mxu0 %v1960
        %2209 = vmatprep.subr.bf16.mxu0 %v1965
        %2210 = vmatpush1.bf16.msra.mxu0 %v1964
        %2211 = vmatprep.subr.bf16.mxu0 %v1969
        %2212 = vmatpush1.bf16.msra.mxu0 %v1968
        %2213 = vmatprep.subr.bf16.mxu0 %v1973
        %2214 = vmatpush1.bf16.msra.mxu0 %v1972
        %2215 = vmatprep.subr.bf16.mxu0 0
        %2216 = vmatpush1.bf16.msra.mxu0 0
        %2217 = vmatprep.subr.bf16.mxu0 0
        %2218 = vmatpush1.bf16.msra.mxu0 0
        %2219 = vmatprep.subr.bf16.mxu0 0
        %2220 = vmatpush1.bf16.msra.mxu0 0
        %2221 = vmatprep.subr.bf16.mxu0 0
        %2222 = vmatpush1.bf16.msra.mxu0 0
        %2223 = vmatprep.subr.bf16.mxu0 0
        %2224 = vmatpush1.bf16.msra.mxu0 0
        %2225 = vmatprep.subr.bf16.mxu0 0
        %2226 = vmatpush1.bf16.msra.mxu0 0
        %2227 = vmatprep.subr.bf16.mxu0 0
        %2228 = vmatpush1.bf16.msra.mxu0 0
        %2229 = vmatprep.subr.bf16.mxu0 0
        %2230 = vmatpush1.bf16.msra.mxu0 0
        %2231 = vmatprep.mubr.bf16.mxu0 0
        %2232 = vmatmul.mubr.bf16.gmra.mrb[0].mxu0 %v1471
        %v2233 = vpop.f32.mrb[0].mxu0
        %v2234 = vadd.f32 %v2191, %v2233
        %v2235 = vpop.f32.mrb[0].mxu0
        %v2236 = vadd.f32 %v2193, %v2235
        %v2237 = vpop.f32.mrb[0].mxu0
        %v2238 = vadd.f32 %v2195, %v2237
        %v2239 = vpop.f32.mrb[0].mxu0
        %v2240 = vadd.f32 %v2197, %v2239
        %2241 = vdwg.mxu0
        %2242 = vst [vmem:[%s287] sm:$0xff] %v2148
        %2243 = vst [vmem:[%s287 + $0x8] sm:$0xff] %v2150
        %2244 = vst [vmem:[%s287 + $0x10] sm:$0xff] %v2234
        %2245 = vst [vmem:[%s287 + $0x18] sm:$0xff] %v2236
        %2246 = vst [vmem:[%s287 + $0x20] sm:$0xff] %v2152
        %2247 = vst [vmem:[%s287 + $0x28] sm:$0xff] %v2154
        %2248 = vst [vmem:[%s287 + $0x30] sm:$0xff] %v2238
        %2249 = vst [vmem:[%s287 + $0x38] sm:$0xff] %v2240
        %s2250 = sand.u32 %s182, 1
        %s2251 = scalar_lea.sflag [#allocation4], %s2250
        %s2252 = sand.u32 %s182, 1
        %s2253 = smul.addr %s2252, 64
        %s2254 = scalar_lea.vmem [#allocation5], %s2253
        // Predicated region
        $region53: #{tpu_custom_call.1} parent=47 // pred_check
          %p2255 = pneg %p192
        $region54: #{tpu_custom_call.1} parent=47 // pred_check_branch
          %2257 = sbr.rel (%p2255) target = $region56
        $region55: #{tpu_custom_call.1} parent=47 // pred_region
          %s2258 = smul.u32 2, %s22
          %s2260 = ssub.s32 1024, 1024
          %2261 = vsyncadd %s2251, %s2260
          %s2262 = smul.addr %s2258, 4
          %s2263 = smul.addr %s2262, 128
          %s2264 = scalar_lea.hbm %s7, %s2263
          %s2265 = sshll.u32 %s2254, 4
          %s2266 = int_to_ptr.vmem [resolvable:$true] %s2265
          %2271 = dma.vmem_to_hbm [thread:$0]  %s2266, 1024, %s2264, %s2251, 512, 512, 32
        $region56: #{tpu_custom_call.1} parent=47 // pred_fallthru
          _
      $region48: #{tpu_custom_call.1} parent=5 // pred_fallthru
        _
      %p2272 = scmp.le.s32.totalorder 2, %s17
      // Predicated region
      $region57: #{tpu_custom_call.1} parent=5 // pred_check
        %p2273 = pneg %p2272
      $region58: #{tpu_custom_call.1} parent=5 // pred_check_branch
        %2275 = sbr.rel (%p2273) target = $region60
      $region59: #{tpu_custom_call.1} parent=5 // pred_region
        %s2276 = ssub.s32 %s17, 2
        // Predicated region
        $region61: #{tpu_custom_call.1} parent=59 // pred_check
          %p2277 = pneg %p198
        $region62: #{tpu_custom_call.1} parent=59 // pred_check_branch
          %2279 = sbr.rel (%p2277) target = $region64
        $region63: #{tpu_custom_call.1} parent=59 // pred_region
          %s2280 = sand.u32 %s183, 1
          %s2281 = scalar_lea.sflag [#allocation4], %s2280
          %s2282 = sand.u32 %s183, 1
          %s2283 = smul.addr %s2282, 64
          %s2284 = scalar_lea.vmem [#allocation5], %s2283
          %2285 = dma.done %s2281, 1024
        $region64: #{tpu_custom_call.1} parent=59 // pred_fallthru
          _
      $region60: #{tpu_custom_call.1} parent=5 // pred_fallthru
        _
    $region6: #{tpu_custom_call.1} parent=1 // loop_footer
      %s21 = sadd.s32 1, %s17
    $region7: #{tpu_custom_call.1} parent=1 // loop_footer_branch
      %16 = sbr.rel target = $region3
    $region8: #{tpu_custom_call.1} parent=1 // loop_exit
      _
    %2286 = vsyncpa [#allocation3], 1
    %s2287 = scalar_lea.sflag [#allocation3], 1
    %2288 = vsyncpa %s2287, 1
    %2289 = vsyncpa [#allocation4], 1
    %s2290 = scalar_lea.sflag [#allocation4], 1
    %2291 = vsyncpa %s2290, 1

</llo_original>
